<compile_context>
chip_gen: v5e
topology: v5e:2x2
jax: 0.10.0
libtpu: 0.0.40
codegen_flags: <defaults>
</compile_context>

<pallas_src>
import functools

import jax
import jax.numpy as jnp
import numpy as np
from jax.experimental import pallas as pl
from jax.experimental.pallas import tpu as pltpu

BN_EPS = 1e-5


# ---------------------------------------------------------------------------
# Host-side helpers (run once in the wrapper, constant-folded under jit)
# ---------------------------------------------------------------------------
def _fold_bn(w, bn):
    """Fold inference BatchNorm into conv weights: y = (w*s) (*) x + (beta - mean*s)."""
    gamma, beta, mean, var = bn
    s = gamma / jnp.sqrt(var + BN_EPS)
    return w * s[:, None, None, None], (beta - mean * s)


def _tap_masks(H, W, dilation):
    """(9, H*W) float32 validity masks for the 3x3 taps (kh,kw row-major)."""
    ys, xs = np.meshgrid(np.arange(H), np.arange(W), indexing="ij")
    ys, xs = ys.reshape(-1), xs.reshape(-1)
    masks = []
    for kh in range(3):
        for kw in range(3):
            dy, dx = (kh - 1) * dilation, (kw - 1) * dilation
            ok = (ys + dy >= 0) & (ys + dy < H) & (xs + dx >= 0) & (xs + dx < W)
            masks.append(ok.astype(np.float32))
    return np.stack(masks, axis=0)


# ---------------------------------------------------------------------------
# Fused Pallas kernel: conv1+bn1+relu -> res2net 3x3 chain -> conv3+bn3
#                      -> identity residual -> relu
# ---------------------------------------------------------------------------
def _bottle2neck_kernel(x_ref, w1_ref, b1_ref, w2_ref, b2_ref, w3_ref, b3_ref,
                        mask_ref, o_ref, *, width, scale, H, W, dilation):
    HW = H * W
    nums = scale - 1
    xb = x_ref[0]                                                  # (Cin, HW)

    # conv1 (1x1) + folded BN + ReLU: one matmul
    out1 = jnp.dot(w1_ref[...], xb, preferred_element_type=jnp.float32)
    out1 = jnp.maximum(out1 + b1_ref[...], 0.0)                    # (width*scale, HW)

    sps = []
    sp = None
    for i in range(nums):
        chunk = out1[i * width:(i + 1) * width, :]                 # sublane-aligned split
        sp = chunk if i == 0 else sp + chunk
        # im2col for the 3x3 conv: lane rolls + boundary masks (no padding copy)
        taps = []
        for kh in range(3):
            for kw in range(3):
                delta = (kh - 1) * dilation * W + (kw - 1) * dilation
                shift = (-delta) % HW
                rolled = pltpu.roll(sp, shift, axis=1) if shift else sp
                taps.append(rolled * mask_ref[kh * 3 + kw])        # (width, HW)
        patches = jnp.concatenate(taps, axis=0)                    # (9*width, HW)
        y = jnp.dot(w2_ref[i], patches, preferred_element_type=jnp.float32)
        sp = jnp.maximum(y + b2_ref[i], 0.0)                       # relu(bn(conv3x3))
        sps.append(sp)

    # conv3 (1x1) + folded BN: accumulate per-branch matmuls (no concat tensor)
    branches = sps + [out1[nums * width:scale * width, :]]
    acc = jnp.dot(w3_ref[0], branches[0], preferred_element_type=jnp.float32)
    for i in range(1, scale):
        acc = acc + jnp.dot(w3_ref[i], branches[i], preferred_element_type=jnp.float32)

    y = acc + b3_ref[...] + xb                                     # identity residual
    o_ref[0] = jnp.maximum(y, 0.0)


def bottle2neck_forward(x, params, *, width, scale, dilation=1):
    """x: (B, inplanes, H, W) f32. Returns (B, planes*4, H, W) f32."""
    B, Cin, H, W = x.shape
    HW = H * W
    nums = scale - 1
    wscale = width * scale
    assert scale >= 2, "scale==1 path not implemented"

    # --- fold BN into weights (done once, on the host / under jit) -----------
    w1, b1 = _fold_bn(params["conv1_w"], params["bn1"])
    w1 = w1.reshape(wscale, Cin)
    b1 = b1.reshape(wscale, 1)

    w2_l, b2_l = [], []
    for i in range(nums):
        wf, bf = _fold_bn(params["convs_w"][i], params["bns"][i])
        # (co, ci, kh, kw) -> (co, kh, kw, ci) -> (co, 9*ci): matches patch order
        w2_l.append(jnp.transpose(wf, (0, 2, 3, 1)).reshape(width, 9 * width))
        b2_l.append(bf.reshape(width, 1))
    w2 = jnp.stack(w2_l, axis=0)                                   # (nums, width, 9*width)
    b2 = jnp.stack(b2_l, axis=0)                                   # (nums, width, 1)

    w3, b3 = _fold_bn(params["conv3_w"], params["bn3"])
    cout = w3.shape[0]
    assert cout == Cin, "identity residual requires planes*4 == inplanes (downsample=None)"
    w3 = w3.reshape(cout, wscale)
    w3 = jnp.stack([w3[:, i * width:(i + 1) * width] for i in range(scale)], 0)  # (scale,cout,width)
    b3 = b3.reshape(cout, 1)

    masks = jnp.asarray(_tap_masks(H, W, dilation))                # (9, HW)
    masks = jnp.broadcast_to(masks[:, None, :], (9, width, HW))    # pre-broadcast, no in-kernel bcast

    x_flat = x.reshape(B, Cin, HW)                                 # lane-dense activations

    kernel = functools.partial(_bottle2neck_kernel, width=width, scale=scale,
                               H=H, W=W, dilation=dilation)
    out = pl.pallas_call(
        kernel,
        out_shape=jax.ShapeDtypeStruct((B, cout, HW), jnp.float32),
        grid=(B,),
        in_specs=[
            pl.BlockSpec((1, Cin, HW), lambda b: (b, 0, 0)),
            pl.BlockSpec((wscale, Cin), lambda b: (0, 0)),
            pl.BlockSpec((wscale, 1), lambda b: (0, 0)),
            pl.BlockSpec((nums, width, 9 * width), lambda b: (0, 0, 0)),
            pl.BlockSpec((nums, width, 1), lambda b: (0, 0, 0)),
            pl.BlockSpec((scale, cout, width), lambda b: (0, 0, 0)),
            pl.BlockSpec((cout, 1), lambda b: (0, 0)),
            pl.BlockSpec((9, width, HW), lambda b: (0, 0, 0)),
        ],
        out_specs=pl.BlockSpec((1, cout, HW), lambda b: (b, 0, 0)),
        compiler_params=pltpu.CompilerParams(dimension_semantics=("parallel",)),
    )(x_flat, w1, b1, w2, b2, w3, b3, masks)
    return out.reshape(B, cout, H, W)


# ---------------------------------------------------------------------------
# Pure-JAX reference (mirrors the PyTorch forward exactly) for validation
# ---------------------------------------------------------------------------
def bottle2neck_reference(x, params, *, width, scale, dilation=1):
    def conv(t, w, padding=0, dil=1):
        return jax.lax.conv_general_dilated(
            t, w, window_strides=(1, 1),
            padding=[(padding, padding), (padding, padding)],
            rhs_dilation=(dil, dil),
            dimension_numbers=("NCHW", "OIHW", "NCHW"),
            precision=jax.lax.Precision.HIGHEST)

    def bn(t, p):
        gamma, beta, mean, var = p
        s = gamma / jnp.sqrt(var + BN_EPS)
        return t * s[None, :, None, None] + (beta - mean * s)[None, :, None, None]

    relu = lambda t: jnp.maximum(t, 0.0)
    nums = scale - 1
    residual = x
    out = relu(bn(conv(x, params["conv1_w"]), params["bn1"]))
    spx = [out[:, i * width:(i + 1) * width] for i in range(scale)]
    outs, sp = [], None
    for i in range(nums):
        sp = spx[i] if i == 0 else sp + spx[i]
        sp = relu(bn(conv(sp, params["convs_w"][i], padding=dilation, dil=dilation),
                     params["bns"][i]))
        outs.append(sp)
    out = jnp.concatenate(outs + [spx[nums]], axis=1)
    out = bn(conv(out, params["conv3_w"]), params["bn3"])
    return relu(out + residual)


# ---------------------------------------------------------------------------
# Deterministic parameter initialization (shapes from the module's __init__)
# ---------------------------------------------------------------------------
def init_params(key, inplanes, planes, *, width, scale):
    expansion = 4
    wscale = width * scale
    nums = scale - 1

    def bn_params(k, c):
        k1, k2, k3, k4 = jax.random.split(k, 4)
        gamma = 1.0 + 0.1 * jax.random.normal(k1, (c,), jnp.float32)
        beta = 0.05 * jax.random.normal(k2, (c,), jnp.float32)
        mean = 0.05 * jax.random.normal(k3, (c,), jnp.float32)
        var = 1.0 + 0.1 * jnp.abs(jax.random.normal(k4, (c,), jnp.float32))
        return (gamma, beta, mean, var)

    keys = jax.random.split(key, 4 + 2 * nums)
    return {
        "conv1_w": 0.1 * jax.random.normal(keys[0], (wscale, inplanes, 1, 1), jnp.float32),
        "bn1": bn_params(keys[1], wscale),
        "convs_w": [0.1 * jax.random.normal(keys[2 + i], (width, width, 3, 3), jnp.float32)
                    for i in range(nums)],
        "bns": [bn_params(keys[2 + nums + i], width) for i in range(nums)],
        "conv3_w": 0.1 * jax.random.normal(keys[2 + 2 * nums],
                                           (planes * expansion, wscale, 1, 1), jnp.float32),
        "bn3": bn_params(keys[3 + 2 * nums], planes * expansion),
    }


if __name__ == "__main__":
    # Bottle2neck(inplanes=32, planes=8, baseWidth=64, scale=4):
    #   width = floor(planes * baseWidth/64) = 8, stype='normal', downsample=None
    B, H, W = 2, 16, 16
    planes, scale, width = 8, 4, 8
    inplanes = planes * 4                      # identity residual path

    key = jax.random.PRNGKey(0)
    kx, kp = jax.random.split(key)
    x = jax.random.normal(kx, (B, inplanes, H, W), jnp.float32)
    params = init_params(kp, inplanes, planes, width=width, scale=scale)

    fwd = jax.jit(functools.partial(bottle2neck_forward,
                                    width=width, scale=scale, dilation=1))
    out = jax.block_until_ready(fwd(x, params))
    assert out.shape == (B, planes * 4, H, W), out.shape
    assert bool(jnp.all(jnp.isfinite(out)))

    # correctness check against the pure-JAX reference of the PyTorch forward
    ref = bottle2neck_reference(x, params, width=width, scale=scale, dilation=1)
    np.testing.assert_allclose(np.asarray(out), np.asarray(ref), rtol=2e-2, atol=2e-2)

    print("KERNEL_OK")
</pallas_src>

<mosaic_0001>
module attributes {stable_mosaic.version = 11 : i64} {
  func.func @_bottle2neck_kernel(%arg0: i32, %arg1: memref<1x32x256xf32, #tpu.memory_space<vmem>>, %arg2: memref<32x32xf32, #tpu.memory_space<vmem>>, %arg3: memref<32x1xf32, #tpu.memory_space<vmem>>, %arg4: memref<3x8x72xf32, #tpu.memory_space<vmem>>, %arg5: memref<3x8x1xf32, #tpu.memory_space<vmem>>, %arg6: memref<4x32x8xf32, #tpu.memory_space<vmem>>, %arg7: memref<32x1xf32, #tpu.memory_space<vmem>>, %arg8: memref<9x8x256xf32, #tpu.memory_space<vmem>>, %arg9: memref<1x32x256xf32, #tpu.memory_space<vmem>>) attributes {dimension_semantics = [#tpu.dimension_semantics<parallel>], iteration_bounds = array<i64: 2>, scalar_prefetch = 0 : i64, scratch_operands = 0 : i64, tpu.core_type = #tpu.core_type<tc>, window_params = [{transform_indices = @transform_0, window_bounds = array<i64: 1, 32, 256>}, {pipeline_mode = #tpu.pipeline_mode<synchronous>, transform_indices = @transform_1, window_bounds = array<i64: 32, 32>}, {pipeline_mode = #tpu.pipeline_mode<synchronous>, transform_indices = @transform_2, window_bounds = array<i64: 32, 1>}, {pipeline_mode = #tpu.pipeline_mode<synchronous>, transform_indices = @transform_3, window_bounds = array<i64: 3, 8, 72>}, {pipeline_mode = #tpu.pipeline_mode<synchronous>, transform_indices = @transform_4, window_bounds = array<i64: 3, 8, 1>}, {pipeline_mode = #tpu.pipeline_mode<synchronous>, transform_indices = @transform_5, window_bounds = array<i64: 4, 32, 8>}, {pipeline_mode = #tpu.pipeline_mode<synchronous>, transform_indices = @transform_6, window_bounds = array<i64: 32, 1>}, {pipeline_mode = #tpu.pipeline_mode<synchronous>, transform_indices = @transform_7, window_bounds = array<i64: 9, 8, 256>}, {transform_indices = @transform_8, window_bounds = array<i64: 1, 32, 256>}]} {
    %c0 = arith.constant 0 : index
    %c0_0 = arith.constant 0 : index
    %c0_1 = arith.constant 0 : index
    %0 = vector.load %arg1[%c0, %c0_0, %c0_1] : memref<1x32x256xf32, #tpu.memory_space<vmem>>, vector<1x32x256xf32>
    %1 = vector.shape_cast %0 : vector<1x32x256xf32> to vector<32x256xf32>
    %c0_2 = arith.constant 0 : index
    %c0_3 = arith.constant 0 : index
    %2 = vector.load %arg2[%c0_2, %c0_3] : memref<32x32xf32, #tpu.memory_space<vmem>>, vector<32x32xf32>
    %cst = arith.constant dense<0.000000e+00> : vector<32x256xf32>
    %3 = tpu.matmul %2, %1, %cst {dimension_numbers = #tpu.dot_dimension_numbers<[1], [0], [0], [1], [0, 0, 1, 1], [], []>} : vector<32x32xf32>, vector<32x256xf32>, vector<32x256xf32> -> vector<32x256xf32>
    %c0_4 = arith.constant 0 : index
    %c0_5 = arith.constant 0 : index
    %4 = vector.load %arg3[%c0_4, %c0_5] : memref<32x1xf32, #tpu.memory_space<vmem>>, vector<32x1xf32>
    %5 = vector.broadcast %4 : vector<32x1xf32> to vector<32x256xf32>
    %6 = arith.addf %3, %5 : vector<32x256xf32>
    %cst_6 = arith.constant 0.000000e+00 : f32
    %7 = vector.broadcast %cst_6 : f32 to vector<32x256xf32>
    %8 = arith.maximumf %6, %7 : vector<32x256xf32>
    %9 = vector.extract_strided_slice %8 {offsets = [0, 0], sizes = [8, 256], strides = [1, 1]} : vector<32x256xf32> to vector<8x256xf32>
    %c17_i32 = arith.constant 17 : i32
    %10 = tpu.dynamic_rotate %9 by %c17_i32 dim 1 : vector<8x256xf32>, i32 -> vector<8x256xf32>
    %c0_7 = arith.constant 0 : index
    %c0_8 = arith.constant 0 : index
    %c0_9 = arith.constant 0 : index
    %11 = vector.load %arg8[%c0_7, %c0_8, %c0_9] : memref<9x8x256xf32, #tpu.memory_space<vmem>>, vector<1x8x256xf32>
    %12 = vector.shape_cast %11 : vector<1x8x256xf32> to vector<8x256xf32>
    %13 = arith.mulf %10, %12 : vector<8x256xf32>
    %c16_i32 = arith.constant 16 : i32
    %14 = tpu.dynamic_rotate %9 by %c16_i32 dim 1 : vector<8x256xf32>, i32 -> vector<8x256xf32>
    %c1 = arith.constant 1 : index
    %c0_10 = arith.constant 0 : index
    %c0_11 = arith.constant 0 : index
    %15 = vector.load %arg8[%c1, %c0_10, %c0_11] : memref<9x8x256xf32, #tpu.memory_space<vmem>>, vector<1x8x256xf32>
    %16 = vector.shape_cast %15 : vector<1x8x256xf32> to vector<8x256xf32>
    %17 = arith.mulf %14, %16 : vector<8x256xf32>
    %c15_i32 = arith.constant 15 : i32
    %18 = tpu.dynamic_rotate %9 by %c15_i32 dim 1 : vector<8x256xf32>, i32 -> vector<8x256xf32>
    %c2 = arith.constant 2 : index
    %c0_12 = arith.constant 0 : index
    %c0_13 = arith.constant 0 : index
    %19 = vector.load %arg8[%c2, %c0_12, %c0_13] : memref<9x8x256xf32, #tpu.memory_space<vmem>>, vector<1x8x256xf32>
    %20 = vector.shape_cast %19 : vector<1x8x256xf32> to vector<8x256xf32>
    %21 = arith.mulf %18, %20 : vector<8x256xf32>
    %c1_i32 = arith.constant 1 : i32
    %22 = tpu.dynamic_rotate %9 by %c1_i32 dim 1 : vector<8x256xf32>, i32 -> vector<8x256xf32>
    %c3 = arith.constant 3 : index
    %c0_14 = arith.constant 0 : index
    %c0_15 = arith.constant 0 : index
    %23 = vector.load %arg8[%c3, %c0_14, %c0_15] : memref<9x8x256xf32, #tpu.memory_space<vmem>>, vector<1x8x256xf32>
    %24 = vector.shape_cast %23 : vector<1x8x256xf32> to vector<8x256xf32>
    %25 = arith.mulf %22, %24 : vector<8x256xf32>
    %c4 = arith.constant 4 : index
    %c0_16 = arith.constant 0 : index
    %c0_17 = arith.constant 0 : index
    %26 = vector.load %arg8[%c4, %c0_16, %c0_17] : memref<9x8x256xf32, #tpu.memory_space<vmem>>, vector<1x8x256xf32>
    %27 = vector.shape_cast %26 : vector<1x8x256xf32> to vector<8x256xf32>
    %28 = arith.mulf %9, %27 : vector<8x256xf32>
    %c255_i32 = arith.constant 255 : i32
    %29 = tpu.dynamic_rotate %9 by %c255_i32 dim 1 : vector<8x256xf32>, i32 -> vector<8x256xf32>
    %c5 = arith.constant 5 : index
    %c0_18 = arith.constant 0 : index
    %c0_19 = arith.constant 0 : index
    %30 = vector.load %arg8[%c5, %c0_18, %c0_19] : memref<9x8x256xf32, #tpu.memory_space<vmem>>, vector<1x8x256xf32>
    %31 = vector.shape_cast %30 : vector<1x8x256xf32> to vector<8x256xf32>
    %32 = arith.mulf %29, %31 : vector<8x256xf32>
    %c241_i32 = arith.constant 241 : i32
    %33 = tpu.dynamic_rotate %9 by %c241_i32 dim 1 : vector<8x256xf32>, i32 -> vector<8x256xf32>
    %c6 = arith.constant 6 : index
    %c0_20 = arith.constant 0 : index
    %c0_21 = arith.constant 0 : index
    %34 = vector.load %arg8[%c6, %c0_20, %c0_21] : memref<9x8x256xf32, #tpu.memory_space<vmem>>, vector<1x8x256xf32>
    %35 = vector.shape_cast %34 : vector<1x8x256xf32> to vector<8x256xf32>
    %36 = arith.mulf %33, %35 : vector<8x256xf32>
    %c240_i32 = arith.constant 240 : i32
    %37 = tpu.dynamic_rotate %9 by %c240_i32 dim 1 : vector<8x256xf32>, i32 -> vector<8x256xf32>
    %c7 = arith.constant 7 : index
    %c0_22 = arith.constant 0 : index
    %c0_23 = arith.constant 0 : index
    %38 = vector.load %arg8[%c7, %c0_22, %c0_23] : memref<9x8x256xf32, #tpu.memory_space<vmem>>, vector<1x8x256xf32>
    %39 = vector.shape_cast %38 : vector<1x8x256xf32> to vector<8x256xf32>
    %40 = arith.mulf %37, %39 : vector<8x256xf32>
    %c239_i32 = arith.constant 239 : i32
    %41 = tpu.dynamic_rotate %9 by %c239_i32 dim 1 : vector<8x256xf32>, i32 -> vector<8x256xf32>
    %c8 = arith.constant 8 : index
    %c0_24 = arith.constant 0 : index
    %c0_25 = arith.constant 0 : index
    %42 = vector.load %arg8[%c8, %c0_24, %c0_25] : memref<9x8x256xf32, #tpu.memory_space<vmem>>, vector<1x8x256xf32>
    %43 = vector.shape_cast %42 : vector<1x8x256xf32> to vector<8x256xf32>
    %44 = arith.mulf %41, %43 : vector<8x256xf32>
    %45 = tpu.concatenate %13, %17, %21, %25, %28, %32, %36, %40, %44 in 0 : vector<8x256xf32>, vector<8x256xf32>, vector<8x256xf32>, vector<8x256xf32>, vector<8x256xf32>, vector<8x256xf32>, vector<8x256xf32>, vector<8x256xf32>, vector<8x256xf32> -> vector<72x256xf32>
    %c0_26 = arith.constant 0 : index
    %c0_27 = arith.constant 0 : index
    %c0_28 = arith.constant 0 : index
    %46 = vector.load %arg4[%c0_26, %c0_27, %c0_28] : memref<3x8x72xf32, #tpu.memory_space<vmem>>, vector<1x8x72xf32>
    %47 = vector.shape_cast %46 : vector<1x8x72xf32> to vector<8x72xf32>
    %cst_29 = arith.constant dense<0.000000e+00> : vector<8x256xf32>
    %48 = tpu.matmul %47, %45, %cst_29 {dimension_numbers = #tpu.dot_dimension_numbers<[1], [0], [0], [1], [0, 0, 1, 1], [], []>} : vector<8x72xf32>, vector<72x256xf32>, vector<8x256xf32> -> vector<8x256xf32>
    %c0_30 = arith.constant 0 : index
    %c0_31 = arith.constant 0 : index
    %c0_32 = arith.constant 0 : index
    %49 = vector.load %arg5[%c0_30, %c0_31, %c0_32] : memref<3x8x1xf32, #tpu.memory_space<vmem>>, vector<1x8x1xf32>
    %50 = vector.shape_cast %49 : vector<1x8x1xf32> to vector<8x1xf32>
    %51 = vector.broadcast %50 : vector<8x1xf32> to vector<8x256xf32>
    %52 = arith.addf %48, %51 : vector<8x256xf32>
    %cst_33 = arith.constant 0.000000e+00 : f32
    %53 = vector.broadcast %cst_33 : f32 to vector<8x256xf32>
    %54 = arith.maximumf %52, %53 : vector<8x256xf32>
    %55 = vector.extract_strided_slice %8 {offsets = [8, 0], sizes = [8, 256], strides = [1, 1]} : vector<32x256xf32> to vector<8x256xf32>
    %56 = arith.addf %54, %55 : vector<8x256xf32>
    %c17_i32_34 = arith.constant 17 : i32
    %57 = tpu.dynamic_rotate %56 by %c17_i32_34 dim 1 : vector<8x256xf32>, i32 -> vector<8x256xf32>
    %c0_35 = arith.constant 0 : index
    %c0_36 = arith.constant 0 : index
    %c0_37 = arith.constant 0 : index
    %58 = vector.load %arg8[%c0_35, %c0_36, %c0_37] : memref<9x8x256xf32, #tpu.memory_space<vmem>>, vector<1x8x256xf32>
    %59 = vector.shape_cast %58 : vector<1x8x256xf32> to vector<8x256xf32>
    %60 = arith.mulf %57, %59 : vector<8x256xf32>
    %c16_i32_38 = arith.constant 16 : i32
    %61 = tpu.dynamic_rotate %56 by %c16_i32_38 dim 1 : vector<8x256xf32>, i32 -> vector<8x256xf32>
    %c1_39 = arith.constant 1 : index
    %c0_40 = arith.constant 0 : index
    %c0_41 = arith.constant 0 : index
    %62 = vector.load %arg8[%c1_39, %c0_40, %c0_41] : memref<9x8x256xf32, #tpu.memory_space<vmem>>, vector<1x8x256xf32>
    %63 = vector.shape_cast %62 : vector<1x8x256xf32> to vector<8x256xf32>
    %64 = arith.mulf %61, %63 : vector<8x256xf32>
    %c15_i32_42 = arith.constant 15 : i32
    %65 = tpu.dynamic_rotate %56 by %c15_i32_42 dim 1 : vector<8x256xf32>, i32 -> vector<8x256xf32>
    %c2_43 = arith.constant 2 : index
    %c0_44 = arith.constant 0 : index
    %c0_45 = arith.constant 0 : index
    %66 = vector.load %arg8[%c2_43, %c0_44, %c0_45] : memref<9x8x256xf32, #tpu.memory_space<vmem>>, vector<1x8x256xf32>
    %67 = vector.shape_cast %66 : vector<1x8x256xf32> to vector<8x256xf32>
    %68 = arith.mulf %65, %67 : vector<8x256xf32>
    %c1_i32_46 = arith.constant 1 : i32
    %69 = tpu.dynamic_rotate %56 by %c1_i32_46 dim 1 : vector<8x256xf32>, i32 -> vector<8x256xf32>
    %c3_47 = arith.constant 3 : index
    %c0_48 = arith.constant 0 : index
    %c0_49 = arith.constant 0 : index
    %70 = vector.load %arg8[%c3_47, %c0_48, %c0_49] : memref<9x8x256xf32, #tpu.memory_space<vmem>>, vector<1x8x256xf32>
    %71 = vector.shape_cast %70 : vector<1x8x256xf32> to vector<8x256xf32>
    %72 = arith.mulf %69, %71 : vector<8x256xf32>
    %c4_50 = arith.constant 4 : index
    %c0_51 = arith.constant 0 : index
    %c0_52 = arith.constant 0 : index
    %73 = vector.load %arg8[%c4_50, %c0_51, %c0_52] : memref<9x8x256xf32, #tpu.memory_space<vmem>>, vector<1x8x256xf32>
    %74 = vector.shape_cast %73 : vector<1x8x256xf32> to vector<8x256xf32>
    %75 = arith.mulf %56, %74 : vector<8x256xf32>
    %c255_i32_53 = arith.constant 255 : i32
    %76 = tpu.dynamic_rotate %56 by %c255_i32_53 dim 1 : vector<8x256xf32>, i32 -> vector<8x256xf32>
    %c5_54 = arith.constant 5 : index
    %c0_55 = arith.constant 0 : index
    %c0_56 = arith.constant 0 : index
    %77 = vector.load %arg8[%c5_54, %c0_55, %c0_56] : memref<9x8x256xf32, #tpu.memory_space<vmem>>, vector<1x8x256xf32>
    %78 = vector.shape_cast %77 : vector<1x8x256xf32> to vector<8x256xf32>
    %79 = arith.mulf %76, %78 : vector<8x256xf32>
    %c241_i32_57 = arith.constant 241 : i32
    %80 = tpu.dynamic_rotate %56 by %c241_i32_57 dim 1 : vector<8x256xf32>, i32 -> vector<8x256xf32>
    %c6_58 = arith.constant 6 : index
    %c0_59 = arith.constant 0 : index
    %c0_60 = arith.constant 0 : index
    %81 = vector.load %arg8[%c6_58, %c0_59, %c0_60] : memref<9x8x256xf32, #tpu.memory_space<vmem>>, vector<1x8x256xf32>
    %82 = vector.shape_cast %81 : vector<1x8x256xf32> to vector<8x256xf32>
    %83 = arith.mulf %80, %82 : vector<8x256xf32>
    %c240_i32_61 = arith.constant 240 : i32
    %84 = tpu.dynamic_rotate %56 by %c240_i32_61 dim 1 : vector<8x256xf32>, i32 -> vector<8x256xf32>
    %c7_62 = arith.constant 7 : index
    %c0_63 = arith.constant 0 : index
    %c0_64 = arith.constant 0 : index
    %85 = vector.load %arg8[%c7_62, %c0_63, %c0_64] : memref<9x8x256xf32, #tpu.memory_space<vmem>>, vector<1x8x256xf32>
    %86 = vector.shape_cast %85 : vector<1x8x256xf32> to vector<8x256xf32>
    %87 = arith.mulf %84, %86 : vector<8x256xf32>
    %c239_i32_65 = arith.constant 239 : i32
    %88 = tpu.dynamic_rotate %56 by %c239_i32_65 dim 1 : vector<8x256xf32>, i32 -> vector<8x256xf32>
    %c8_66 = arith.constant 8 : index
    %c0_67 = arith.constant 0 : index
    %c0_68 = arith.constant 0 : index
    %89 = vector.load %arg8[%c8_66, %c0_67, %c0_68] : memref<9x8x256xf32, #tpu.memory_space<vmem>>, vector<1x8x256xf32>
    %90 = vector.shape_cast %89 : vector<1x8x256xf32> to vector<8x256xf32>
    %91 = arith.mulf %88, %90 : vector<8x256xf32>
    %92 = tpu.concatenate %60, %64, %68, %72, %75, %79, %83, %87, %91 in 0 : vector<8x256xf32>, vector<8x256xf32>, vector<8x256xf32>, vector<8x256xf32>, vector<8x256xf32>, vector<8x256xf32>, vector<8x256xf32>, vector<8x256xf32>, vector<8x256xf32> -> vector<72x256xf32>
    %c1_69 = arith.constant 1 : index
    %c0_70 = arith.constant 0 : index
    %c0_71 = arith.constant 0 : index
    %93 = vector.load %arg4[%c1_69, %c0_70, %c0_71] : memref<3x8x72xf32, #tpu.memory_space<vmem>>, vector<1x8x72xf32>
    %94 = vector.shape_cast %93 : vector<1x8x72xf32> to vector<8x72xf32>
    %cst_72 = arith.constant dense<0.000000e+00> : vector<8x256xf32>
    %95 = tpu.matmul %94, %92, %cst_72 {dimension_numbers = #tpu.dot_dimension_numbers<[1], [0], [0], [1], [0, 0, 1, 1], [], []>} : vector<8x72xf32>, vector<72x256xf32>, vector<8x256xf32> -> vector<8x256xf32>
    %c1_73 = arith.constant 1 : index
    %c0_74 = arith.constant 0 : index
    %c0_75 = arith.constant 0 : index
    %96 = vector.load %arg5[%c1_73, %c0_74, %c0_75] : memref<3x8x1xf32, #tpu.memory_space<vmem>>, vector<1x8x1xf32>
    %97 = vector.shape_cast %96 : vector<1x8x1xf32> to vector<8x1xf32>
    %98 = vector.broadcast %97 : vector<8x1xf32> to vector<8x256xf32>
    %99 = arith.addf %95, %98 : vector<8x256xf32>
    %cst_76 = arith.constant 0.000000e+00 : f32
    %100 = vector.broadcast %cst_76 : f32 to vector<8x256xf32>
    %101 = arith.maximumf %99, %100 : vector<8x256xf32>
    %102 = vector.extract_strided_slice %8 {offsets = [16, 0], sizes = [8, 256], strides = [1, 1]} : vector<32x256xf32> to vector<8x256xf32>
    %103 = arith.addf %101, %102 : vector<8x256xf32>
    %c17_i32_77 = arith.constant 17 : i32
    %104 = tpu.dynamic_rotate %103 by %c17_i32_77 dim 1 : vector<8x256xf32>, i32 -> vector<8x256xf32>
    %c0_78 = arith.constant 0 : index
    %c0_79 = arith.constant 0 : index
    %c0_80 = arith.constant 0 : index
    %105 = vector.load %arg8[%c0_78, %c0_79, %c0_80] : memref<9x8x256xf32, #tpu.memory_space<vmem>>, vector<1x8x256xf32>
    %106 = vector.shape_cast %105 : vector<1x8x256xf32> to vector<8x256xf32>
    %107 = arith.mulf %104, %106 : vector<8x256xf32>
    %c16_i32_81 = arith.constant 16 : i32
    %108 = tpu.dynamic_rotate %103 by %c16_i32_81 dim 1 : vector<8x256xf32>, i32 -> vector<8x256xf32>
    %c1_82 = arith.constant 1 : index
    %c0_83 = arith.constant 0 : index
    %c0_84 = arith.constant 0 : index
    %109 = vector.load %arg8[%c1_82, %c0_83, %c0_84] : memref<9x8x256xf32, #tpu.memory_space<vmem>>, vector<1x8x256xf32>
    %110 = vector.shape_cast %109 : vector<1x8x256xf32> to vector<8x256xf32>
    %111 = arith.mulf %108, %110 : vector<8x256xf32>
    %c15_i32_85 = arith.constant 15 : i32
    %112 = tpu.dynamic_rotate %103 by %c15_i32_85 dim 1 : vector<8x256xf32>, i32 -> vector<8x256xf32>
    %c2_86 = arith.constant 2 : index
    %c0_87 = arith.constant 0 : index
    %c0_88 = arith.constant 0 : index
    %113 = vector.load %arg8[%c2_86, %c0_87, %c0_88] : memref<9x8x256xf32, #tpu.memory_space<vmem>>, vector<1x8x256xf32>
    %114 = vector.shape_cast %113 : vector<1x8x256xf32> to vector<8x256xf32>
    %115 = arith.mulf %112, %114 : vector<8x256xf32>
    %c1_i32_89 = arith.constant 1 : i32
    %116 = tpu.dynamic_rotate %103 by %c1_i32_89 dim 1 : vector<8x256xf32>, i32 -> vector<8x256xf32>
    %c3_90 = arith.constant 3 : index
    %c0_91 = arith.constant 0 : index
    %c0_92 = arith.constant 0 : index
    %117 = vector.load %arg8[%c3_90, %c0_91, %c0_92] : memref<9x8x256xf32, #tpu.memory_space<vmem>>, vector<1x8x256xf32>
    %118 = vector.shape_cast %117 : vector<1x8x256xf32> to vector<8x256xf32>
    %119 = arith.mulf %116, %118 : vector<8x256xf32>
    %c4_93 = arith.constant 4 : index
    %c0_94 = arith.constant 0 : index
    %c0_95 = arith.constant 0 : index
    %120 = vector.load %arg8[%c4_93, %c0_94, %c0_95] : memref<9x8x256xf32, #tpu.memory_space<vmem>>, vector<1x8x256xf32>
    %121 = vector.shape_cast %120 : vector<1x8x256xf32> to vector<8x256xf32>
    %122 = arith.mulf %103, %121 : vector<8x256xf32>
    %c255_i32_96 = arith.constant 255 : i32
    %123 = tpu.dynamic_rotate %103 by %c255_i32_96 dim 1 : vector<8x256xf32>, i32 -> vector<8x256xf32>
    %c5_97 = arith.constant 5 : index
    %c0_98 = arith.constant 0 : index
    %c0_99 = arith.constant 0 : index
    %124 = vector.load %arg8[%c5_97, %c0_98, %c0_99] : memref<9x8x256xf32, #tpu.memory_space<vmem>>, vector<1x8x256xf32>
    %125 = vector.shape_cast %124 : vector<1x8x256xf32> to vector<8x256xf32>
    %126 = arith.mulf %123, %125 : vector<8x256xf32>
    %c241_i32_100 = arith.constant 241 : i32
    %127 = tpu.dynamic_rotate %103 by %c241_i32_100 dim 1 : vector<8x256xf32>, i32 -> vector<8x256xf32>
    %c6_101 = arith.constant 6 : index
    %c0_102 = arith.constant 0 : index
    %c0_103 = arith.constant 0 : index
    %128 = vector.load %arg8[%c6_101, %c0_102, %c0_103] : memref<9x8x256xf32, #tpu.memory_space<vmem>>, vector<1x8x256xf32>
    %129 = vector.shape_cast %128 : vector<1x8x256xf32> to vector<8x256xf32>
    %130 = arith.mulf %127, %129 : vector<8x256xf32>
    %c240_i32_104 = arith.constant 240 : i32
    %131 = tpu.dynamic_rotate %103 by %c240_i32_104 dim 1 : vector<8x256xf32>, i32 -> vector<8x256xf32>
    %c7_105 = arith.constant 7 : index
    %c0_106 = arith.constant 0 : index
    %c0_107 = arith.constant 0 : index
    %132 = vector.load %arg8[%c7_105, %c0_106, %c0_107] : memref<9x8x256xf32, #tpu.memory_space<vmem>>, vector<1x8x256xf32>
    %133 = vector.shape_cast %132 : vector<1x8x256xf32> to vector<8x256xf32>
    %134 = arith.mulf %131, %133 : vector<8x256xf32>
    %c239_i32_108 = arith.constant 239 : i32
    %135 = tpu.dynamic_rotate %103 by %c239_i32_108 dim 1 : vector<8x256xf32>, i32 -> vector<8x256xf32>
    %c8_109 = arith.constant 8 : index
    %c0_110 = arith.constant 0 : index
    %c0_111 = arith.constant 0 : index
    %136 = vector.load %arg8[%c8_109, %c0_110, %c0_111] : memref<9x8x256xf32, #tpu.memory_space<vmem>>, vector<1x8x256xf32>
    %137 = vector.shape_cast %136 : vector<1x8x256xf32> to vector<8x256xf32>
    %138 = arith.mulf %135, %137 : vector<8x256xf32>
    %139 = tpu.concatenate %107, %111, %115, %119, %122, %126, %130, %134, %138 in 0 : vector<8x256xf32>, vector<8x256xf32>, vector<8x256xf32>, vector<8x256xf32>, vector<8x256xf32>, vector<8x256xf32>, vector<8x256xf32>, vector<8x256xf32>, vector<8x256xf32> -> vector<72x256xf32>
    %c2_112 = arith.constant 2 : index
    %c0_113 = arith.constant 0 : index
    %c0_114 = arith.constant 0 : index
    %140 = vector.load %arg4[%c2_112, %c0_113, %c0_114] : memref<3x8x72xf32, #tpu.memory_space<vmem>>, vector<1x8x72xf32>
    %141 = vector.shape_cast %140 : vector<1x8x72xf32> to vector<8x72xf32>
    %cst_115 = arith.constant dense<0.000000e+00> : vector<8x256xf32>
    %142 = tpu.matmul %141, %139, %cst_115 {dimension_numbers = #tpu.dot_dimension_numbers<[1], [0], [0], [1], [0, 0, 1, 1], [], []>} : vector<8x72xf32>, vector<72x256xf32>, vector<8x256xf32> -> vector<8x256xf32>
    %c2_116 = arith.constant 2 : index
    %c0_117 = arith.constant 0 : index
    %c0_118 = arith.constant 0 : index
    %143 = vector.load %arg5[%c2_116, %c0_117, %c0_118] : memref<3x8x1xf32, #tpu.memory_space<vmem>>, vector<1x8x1xf32>
    %144 = vector.shape_cast %143 : vector<1x8x1xf32> to vector<8x1xf32>
    %145 = vector.broadcast %144 : vector<8x1xf32> to vector<8x256xf32>
    %146 = arith.addf %142, %145 : vector<8x256xf32>
    %cst_119 = arith.constant 0.000000e+00 : f32
    %147 = vector.broadcast %cst_119 : f32 to vector<8x256xf32>
    %148 = arith.maximumf %146, %147 : vector<8x256xf32>
    %149 = vector.extract_strided_slice %8 {offsets = [24, 0], sizes = [8, 256], strides = [1, 1]} : vector<32x256xf32> to vector<8x256xf32>
    %c0_120 = arith.constant 0 : index
    %c0_121 = arith.constant 0 : index
    %c0_122 = arith.constant 0 : index
    %150 = vector.load %arg6[%c0_120, %c0_121, %c0_122] : memref<4x32x8xf32, #tpu.memory_space<vmem>>, vector<1x32x8xf32>
    %151 = vector.shape_cast %150 : vector<1x32x8xf32> to vector<32x8xf32>
    %cst_123 = arith.constant dense<0.000000e+00> : vector<32x256xf32>
    %152 = tpu.matmul %151, %54, %cst_123 {dimension_numbers = #tpu.dot_dimension_numbers<[1], [0], [0], [1], [0, 0, 1, 1], [], []>} : vector<32x8xf32>, vector<8x256xf32>, vector<32x256xf32> -> vector<32x256xf32>
    %c1_124 = arith.constant 1 : index
    %c0_125 = arith.constant 0 : index
    %c0_126 = arith.constant 0 : index
    %153 = vector.load %arg6[%c1_124, %c0_125, %c0_126] : memref<4x32x8xf32, #tpu.memory_space<vmem>>, vector<1x32x8xf32>
    %154 = vector.shape_cast %153 : vector<1x32x8xf32> to vector<32x8xf32>
    %cst_127 = arith.constant dense<0.000000e+00> : vector<32x256xf32>
    %155 = tpu.matmul %154, %101, %cst_127 {dimension_numbers = #tpu.dot_dimension_numbers<[1], [0], [0], [1], [0, 0, 1, 1], [], []>} : vector<32x8xf32>, vector<8x256xf32>, vector<32x256xf32> -> vector<32x256xf32>
    %156 = arith.addf %152, %155 : vector<32x256xf32>
    %c2_128 = arith.constant 2 : index
    %c0_129 = arith.constant 0 : index
    %c0_130 = arith.constant 0 : index
    %157 = vector.load %arg6[%c2_128, %c0_129, %c0_130] : memref<4x32x8xf32, #tpu.memory_space<vmem>>, vector<1x32x8xf32>
    %158 = vector.shape_cast %157 : vector<1x32x8xf32> to vector<32x8xf32>
    %cst_131 = arith.constant dense<0.000000e+00> : vector<32x256xf32>
    %159 = tpu.matmul %158, %148, %cst_131 {dimension_numbers = #tpu.dot_dimension_numbers<[1], [0], [0], [1], [0, 0, 1, 1], [], []>} : vector<32x8xf32>, vector<8x256xf32>, vector<32x256xf32> -> vector<32x256xf32>
    %160 = arith.addf %156, %159 : vector<32x256xf32>
    %c3_132 = arith.constant 3 : index
    %c0_133 = arith.constant 0 : index
    %c0_134 = arith.constant 0 : index
    %161 = vector.load %arg6[%c3_132, %c0_133, %c0_134] : memref<4x32x8xf32, #tpu.memory_space<vmem>>, vector<1x32x8xf32>
    %162 = vector.shape_cast %161 : vector<1x32x8xf32> to vector<32x8xf32>
    %cst_135 = arith.constant dense<0.000000e+00> : vector<32x256xf32>
    %163 = tpu.matmul %162, %149, %cst_135 {dimension_numbers = #tpu.dot_dimension_numbers<[1], [0], [0], [1], [0, 0, 1, 1], [], []>} : vector<32x8xf32>, vector<8x256xf32>, vector<32x256xf32> -> vector<32x256xf32>
    %164 = arith.addf %160, %163 : vector<32x256xf32>
    %c0_136 = arith.constant 0 : index
    %c0_137 = arith.constant 0 : index
    %165 = vector.load %arg7[%c0_136, %c0_137] : memref<32x1xf32, #tpu.memory_space<vmem>>, vector<32x1xf32>
    %166 = vector.broadcast %165 : vector<32x1xf32> to vector<32x256xf32>
    %167 = arith.addf %164, %166 : vector<32x256xf32>
    %168 = arith.addf %167, %1 : vector<32x256xf32>
    %cst_138 = arith.constant 0.000000e+00 : f32
    %169 = vector.broadcast %cst_138 : f32 to vector<32x256xf32>
    %170 = arith.maximumf %168, %169 : vector<32x256xf32>
    %c0_139 = arith.constant 0 : index
    %c0_140 = arith.constant 0 : index
    %c0_141 = arith.constant 0 : index
    %171 = vector.load %arg9[%c0_139, %c0_140, %c0_141] : memref<1x32x256xf32, #tpu.memory_space<vmem>>, vector<1x32x256xf32>
    %172 = vector.shape_cast %171 : vector<1x32x256xf32> to vector<32x256xf32>
    %173 = vector.shape_cast %170 : vector<32x256xf32> to vector<1x32x256xf32>
    tpu.vector_store %arg9[%c0_139, %c0_140, %c0_141], %173 {strides = array<i32>} : memref<1x32x256xf32, #tpu.memory_space<vmem>>, vector<1x32x256xf32>,
    return
  }
  func.func @transform_0(%arg0: i32) -> (i32, i32, i32) {
    %c0_i32 = arith.constant 0 : i32
    %c0_i32_0 = arith.constant 0 : i32
    %c0_i32_1 = arith.constant 0 : i32
    return %arg0, %c0_i32, %c0_i32_0 : i32, i32, i32
  }
  func.func @transform_1(%arg0: i32) -> (i32, i32) {
    %c0_i32 = arith.constant 0 : i32
    %c0_i32_0 = arith.constant 0 : i32
    %c0_i32_1 = arith.constant 0 : i32
    return %c0_i32, %c0_i32_0 : i32, i32
  }
  func.func @transform_2(%arg0: i32) -> (i32, i32) {
    %c0_i32 = arith.constant 0 : i32
    %c0_i32_0 = arith.constant 0 : i32
    %c0_i32_1 = arith.constant 0 : i32
    return %c0_i32, %c0_i32_0 : i32, i32
  }
  func.func @transform_3(%arg0: i32) -> (i32, i32, i32) {
    %c0_i32 = arith.constant 0 : i32
    %c0_i32_0 = arith.constant 0 : i32
    %c0_i32_1 = arith.constant 0 : i32
    %c0_i32_2 = arith.constant 0 : i32
    return %c0_i32, %c0_i32_0, %c0_i32_1 : i32, i32, i32
  }
  func.func @transform_4(%arg0: i32) -> (i32, i32, i32) {
    %c0_i32 = arith.constant 0 : i32
    %c0_i32_0 = arith.constant 0 : i32
    %c0_i32_1 = arith.constant 0 : i32
    %c0_i32_2 = arith.constant 0 : i32
    return %c0_i32, %c0_i32_0, %c0_i32_1 : i32, i32, i32
  }
  func.func @transform_5(%arg0: i32) -> (i32, i32, i32) {
    %c0_i32 = arith.constant 0 : i32
    %c0_i32_0 = arith.constant 0 : i32
    %c0_i32_1 = arith.constant 0 : i32
    %c0_i32_2 = arith.constant 0 : i32
    return %c0_i32, %c0_i32_0, %c0_i32_1 : i32, i32, i32
  }
  func.func @transform_6(%arg0: i32) -> (i32, i32) {
    %c0_i32 = arith.constant 0 : i32
    %c0_i32_0 = arith.constant 0 : i32
    %c0_i32_1 = arith.constant 0 : i32
    return %c0_i32, %c0_i32_0 : i32, i32
  }
  func.func @transform_7(%arg0: i32) -> (i32, i32, i32) {
    %c0_i32 = arith.constant 0 : i32
    %c0_i32_0 = arith.constant 0 : i32
    %c0_i32_1 = arith.constant 0 : i32
    %c0_i32_2 = arith.constant 0 : i32
    return %c0_i32, %c0_i32_0, %c0_i32_1 : i32, i32, i32
  }
  func.func @transform_8(%arg0: i32) -> (i32, i32, i32) {
    %c0_i32 = arith.constant 0 : i32
    %c0_i32_0 = arith.constant 0 : i32
    %c0_i32_1 = arith.constant 0 : i32
    return %arg0, %c0_i32, %c0_i32_0 : i32, i32, i32
  }
}

</mosaic_0001>

<llo_original>
// kernel: bottle2neck_forward.1
$region0: #{bottle2neck_forward.1}
  #allocation0 [shape = 'u32[]', space=smem, size = 0x4, offset = 0x4, fixed_abs, tag = 'smem constant byte address 0x4 - core index']
  #allocation1 [shape = 'u32[72,128]{1,0:T(1,128)}', space=vmem, size = 0x9000, scoped, tag = 'internal scratch']
  %s0 = inlined_call_operand.vmem [shape: f32[2,32,256], index: 0, kind: input, shape index: {}]
  %s1 = inlined_call_operand.vmem [shape: f32[32,32], index: 1, kind: input, shape index: {}]
  %s2 = inlined_call_operand.vmem [shape: f32[32,1], index: 2, kind: input, shape index: {}]
  %s3 = inlined_call_operand.vmem [shape: f32[3,8,72], index: 3, kind: input, shape index: {}]
  %s4 = inlined_call_operand.vmem [shape: f32[3,8,1], index: 4, kind: input, shape index: {}]
  %s5 = inlined_call_operand.vmem [shape: f32[4,32,8], index: 5, kind: input, shape index: {}]
  %s6 = inlined_call_operand.vmem [shape: f32[32,1], index: 6, kind: input, shape index: {}]
  %s7 = inlined_call_operand.vmem [shape: f32[9,8,256], index: 7, kind: input, shape index: {}]
  %s8 = inlined_call_operand.vmem [shape: f32[2,32,256], index: 8, kind: output, shape index: {}]
  %s9 = sld [smem:[#allocation0]]
  $region65: #{bottle2neck_forward.1} parent=0
    _
  %s11 = ssub.s32 1, %s9
  %s12 = scalar_select 0, %s11, %s9
  loop: start=0, step=1, limit=4
  $region2: #{bottle2neck_forward.1} parent=0 // loop_pre_header
    _
  $region3: #{bottle2neck_forward.1} parent=0 // loop_header
    %s14 = sphi 0, %s18
    %p15 = scmp.ge.s32.totalorder %s14, 4
    %s24 = sphi 0, %s26
    %s27 = sphi 0, %s24
    %s28 = sphi 0, %s27
    %s44 = sphi 0, %s28
    %s48 = sphi 0, %s48
    %s50 = sphi 0, %s48
    %s51 = sphi 0, %s50
    %s65 = sphi 0, %s51
    %s69 = sphi 0, %s69
    %s71 = sphi 0, %s69
    %s72 = sphi 0, %s71
    %s86 = sphi 0, %s72
    %s90 = sphi 0, %s90
    %s92 = sphi 0, %s90
    %s93 = sphi 0, %s92
    %s107 = sphi 0, %s93
    %s111 = sphi 0, %s111
    %s113 = sphi 0, %s111
    %s114 = sphi 0, %s113
    %s128 = sphi 0, %s114
    %s132 = sphi 0, %s132
    %s134 = sphi 0, %s132
    %s135 = sphi 0, %s134
    %s149 = sphi 0, %s135
    %s153 = sphi 0, %s153
    %s155 = sphi 0, %s153
    %s156 = sphi 0, %s155
    %s170 = sphi 0, %s156
    %s174 = sphi 0, %s174
    %s176 = sphi 0, %s174
    %s177 = sphi 0, %s176
    %s191 = sphi 0, %s177
    %s197 = sphi 0, %s199
    %s200 = sphi 0, %s197
    %s201 = sphi 0, %s200
    %s217 = sphi 0, %s201
  $region4: #{bottle2neck_forward.1} parent=0 // loop_header_branch
    %17 = sbr.rel (%p15) target = $region8
  $region5: #{bottle2neck_forward.1} parent=0 // loop_body
    %s19 = ssub.s32 %s14, 1
    %s20 = ssub.s32 %s14, 2
    %s21 = sadd.s32 %s14, 1
    %s22 = ssub.s32 %s14, %s21
    %p23 = scmp.eq.s32.totalorder %s22, 0
    %s25 = sadd.s32 %s24, 1
    %s26 = scalar_select %p23, %s24, %s25
    %p29 = pneg %p23
    %p30 = scmp.eq.s32.totalorder %s14, 1
    %p31 = por %p29, %p30
    %p32 = scmp.ne.s32.totalorder %s24, %s27
    %p33 = scmp.eq.s32.totalorder %s14, 0
    %p34 = por %p32, %p33
    %p35 = scmp.ne.s32.totalorder %s24, %s27
    %p36 = scmp.eq.s32.totalorder %s19, 1
    %p37 = por %p35, %p36
    %p38 = scmp.ne.s32.totalorder %s27, %s28
    %p39 = scmp.eq.s32.totalorder %s19, 0
    %p40 = por %p38, %p39
    %p41 = scmp.ne.s32.totalorder %s27, %s28
    %p42 = scmp.eq.s32.totalorder %s20, 1
    %p43 = por %p41, %p42
    %p45 = scmp.ne.s32.totalorder %s28, %s44
    %p46 = scmp.eq.s32.totalorder %s20, 0
    %p47 = por %p45, %p46
    %s49 = sadd.s32 %s48, 1
    %p52 = scmp.eq.s32.totalorder %s14, 1
    %p53 = scmp.ne.s32.totalorder %s48, %s50
    %p54 = scmp.eq.s32.totalorder %s14, 0
    %p55 = por %p53, %p54
    %p56 = scmp.ne.s32.totalorder %s48, %s50
    %p57 = scmp.eq.s32.totalorder %s19, 1
    %p58 = por %p56, %p57
    %p59 = scmp.ne.s32.totalorder %s50, %s51
    %p60 = scmp.eq.s32.totalorder %s19, 0
    %p61 = por %p59, %p60
    %p62 = scmp.ne.s32.totalorder %s50, %s51
    %p63 = scmp.eq.s32.totalorder %s20, 1
    %p64 = por %p62, %p63
    %p66 = scmp.ne.s32.totalorder %s51, %s65
    %p67 = scmp.eq.s32.totalorder %s20, 0
    %p68 = por %p66, %p67
    %s70 = sadd.s32 %s69, 1
    %p73 = scmp.eq.s32.totalorder %s14, 1
    %p74 = scmp.ne.s32.totalorder %s69, %s71
    %p75 = scmp.eq.s32.totalorder %s14, 0
    %p76 = por %p74, %p75
    %p77 = scmp.ne.s32.totalorder %s69, %s71
    %p78 = scmp.eq.s32.totalorder %s19, 1
    %p79 = por %p77, %p78
    %p80 = scmp.ne.s32.totalorder %s71, %s72
    %p81 = scmp.eq.s32.totalorder %s19, 0
    %p82 = por %p80, %p81
    %p83 = scmp.ne.s32.totalorder %s71, %s72
    %p84 = scmp.eq.s32.totalorder %s20, 1
    %p85 = por %p83, %p84
    %p87 = scmp.ne.s32.totalorder %s72, %s86
    %p88 = scmp.eq.s32.totalorder %s20, 0
    %p89 = por %p87, %p88
    %s91 = sadd.s32 %s90, 1
    %p94 = scmp.eq.s32.totalorder %s14, 1
    %p95 = scmp.ne.s32.totalorder %s90, %s92
    %p96 = scmp.eq.s32.totalorder %s14, 0
    %p97 = por %p95, %p96
    %p98 = scmp.ne.s32.totalorder %s90, %s92
    %p99 = scmp.eq.s32.totalorder %s19, 1
    %p100 = por %p98, %p99
    %p101 = scmp.ne.s32.totalorder %s92, %s93
    %p102 = scmp.eq.s32.totalorder %s19, 0
    %p103 = por %p101, %p102
    %p104 = scmp.ne.s32.totalorder %s92, %s93
    %p105 = scmp.eq.s32.totalorder %s20, 1
    %p106 = por %p104, %p105
    %p108 = scmp.ne.s32.totalorder %s93, %s107
    %p109 = scmp.eq.s32.totalorder %s20, 0
    %p110 = por %p108, %p109
    %s112 = sadd.s32 %s111, 1
    %p115 = scmp.eq.s32.totalorder %s14, 1
    %p116 = scmp.ne.s32.totalorder %s111, %s113
    %p117 = scmp.eq.s32.totalorder %s14, 0
    %p118 = por %p116, %p117
    %p119 = scmp.ne.s32.totalorder %s111, %s113
    %p120 = scmp.eq.s32.totalorder %s19, 1
    %p121 = por %p119, %p120
    %p122 = scmp.ne.s32.totalorder %s113, %s114
    %p123 = scmp.eq.s32.totalorder %s19, 0
    %p124 = por %p122, %p123
    %p125 = scmp.ne.s32.totalorder %s113, %s114
    %p126 = scmp.eq.s32.totalorder %s20, 1
    %p127 = por %p125, %p126
    %p129 = scmp.ne.s32.totalorder %s114, %s128
    %p130 = scmp.eq.s32.totalorder %s20, 0
    %p131 = por %p129, %p130
    %s133 = sadd.s32 %s132, 1
    %p136 = scmp.eq.s32.totalorder %s14, 1
    %p137 = scmp.ne.s32.totalorder %s132, %s134
    %p138 = scmp.eq.s32.totalorder %s14, 0
    %p139 = por %p137, %p138
    %p140 = scmp.ne.s32.totalorder %s132, %s134
    %p141 = scmp.eq.s32.totalorder %s19, 1
    %p142 = por %p140, %p141
    %p143 = scmp.ne.s32.totalorder %s134, %s135
    %p144 = scmp.eq.s32.totalorder %s19, 0
    %p145 = por %p143, %p144
    %p146 = scmp.ne.s32.totalorder %s134, %s135
    %p147 = scmp.eq.s32.totalorder %s20, 1
    %p148 = por %p146, %p147
    %p150 = scmp.ne.s32.totalorder %s135, %s149
    %p151 = scmp.eq.s32.totalorder %s20, 0
    %p152 = por %p150, %p151
    %s154 = sadd.s32 %s153, 1
    %p157 = scmp.eq.s32.totalorder %s14, 1
    %p158 = scmp.ne.s32.totalorder %s153, %s155
    %p159 = scmp.eq.s32.totalorder %s14, 0
    %p160 = por %p158, %p159
    %p161 = scmp.ne.s32.totalorder %s153, %s155
    %p162 = scmp.eq.s32.totalorder %s19, 1
    %p163 = por %p161, %p162
    %p164 = scmp.ne.s32.totalorder %s155, %s156
    %p165 = scmp.eq.s32.totalorder %s19, 0
    %p166 = por %p164, %p165
    %p167 = scmp.ne.s32.totalorder %s155, %s156
    %p168 = scmp.eq.s32.totalorder %s20, 1
    %p169 = por %p167, %p168
    %p171 = scmp.ne.s32.totalorder %s156, %s170
    %p172 = scmp.eq.s32.totalorder %s20, 0
    %p173 = por %p171, %p172
    %s175 = sadd.s32 %s174, 1
    %p178 = scmp.eq.s32.totalorder %s14, 1
    %p179 = scmp.ne.s32.totalorder %s174, %s176
    %p180 = scmp.eq.s32.totalorder %s14, 0
    %p181 = por %p179, %p180
    %p182 = scmp.ne.s32.totalorder %s174, %s176
    %p183 = scmp.eq.s32.totalorder %s19, 1
    %p184 = por %p182, %p183
    %p185 = scmp.ne.s32.totalorder %s176, %s177
    %p186 = scmp.eq.s32.totalorder %s19, 0
    %p187 = por %p185, %p186
    %p188 = scmp.ne.s32.totalorder %s176, %s177
    %p189 = scmp.eq.s32.totalorder %s20, 1
    %p190 = por %p188, %p189
    %p192 = scmp.ne.s32.totalorder %s177, %s191
    %p193 = scmp.eq.s32.totalorder %s20, 0
    %p194 = por %p192, %p193
    %s195 = ssub.s32 %s14, %s21
    %p196 = scmp.eq.s32.totalorder %s195, 0
    %s198 = sadd.s32 %s197, 1
    %s199 = scalar_select %p196, %s197, %s198
    %p202 = pneg %p196
    %p203 = scmp.eq.s32.totalorder %s14, 1
    %p204 = por %p202, %p203
    %p205 = scmp.ne.s32.totalorder %s197, %s200
    %p206 = scmp.eq.s32.totalorder %s14, 0
    %p207 = por %p205, %p206
    %p208 = scmp.ne.s32.totalorder %s197, %s200
    %p209 = scmp.eq.s32.totalorder %s19, 1
    %p210 = por %p208, %p209
    %p211 = scmp.ne.s32.totalorder %s200, %s201
    %p212 = scmp.eq.s32.totalorder %s19, 0
    %p213 = por %p211, %p212
    %p214 = scmp.ne.s32.totalorder %s200, %s201
    %p215 = scmp.eq.s32.totalorder %s20, 1
    %p216 = por %p214, %p215
    %p218 = scmp.ne.s32.totalorder %s201, %s217
    %p219 = scmp.eq.s32.totalorder %s20, 0
    %p220 = por %p218, %p219
    %p221 = scmp.le.s32.totalorder 1, %s14
    %p222 = scmp.lt.s32.totalorder %s14, 3
    %p223 = pnand %p221, %p222
    %p224 = pneg %p223
    // Predicated region
    $region9: #{bottle2neck_forward.1} parent=5 // pred_check
      _
    $region10: #{bottle2neck_forward.1} parent=5 // pred_check_branch
      %226 = sbr.rel (%p223) target = $region12
    $region11: #{bottle2neck_forward.1} parent=5 // pred_region
      %s227 = ssub.s32 %s14, 1
      // Predicated region
      $region13: #{bottle2neck_forward.1} parent=11 // pred_check
        %p228 = pneg %p61
      $region14: #{bottle2neck_forward.1} parent=11 // pred_check_branch
        %230 = sbr.rel (%p228) target = $region16
      $region15: #{bottle2neck_forward.1} parent=11 // pred_region
        _
      $region16: #{bottle2neck_forward.1} parent=11 // pred_fallthru
        _
      // Predicated region
      $region17: #{bottle2neck_forward.1} parent=11 // pred_check
        %p231 = pneg %p82
      $region18: #{bottle2neck_forward.1} parent=11 // pred_check_branch
        %233 = sbr.rel (%p231) target = $region20
      $region19: #{bottle2neck_forward.1} parent=11 // pred_region
        _
      $region20: #{bottle2neck_forward.1} parent=11 // pred_fallthru
        _
      // Predicated region
      $region21: #{bottle2neck_forward.1} parent=11 // pred_check
        %p234 = pneg %p103
      $region22: #{bottle2neck_forward.1} parent=11 // pred_check_branch
        %236 = sbr.rel (%p234) target = $region24
      $region23: #{bottle2neck_forward.1} parent=11 // pred_region
        _
      $region24: #{bottle2neck_forward.1} parent=11 // pred_fallthru
        _
      // Predicated region
      $region25: #{bottle2neck_forward.1} parent=11 // pred_check
        %p237 = pneg %p124
      $region26: #{bottle2neck_forward.1} parent=11 // pred_check_branch
        %239 = sbr.rel (%p237) target = $region28
      $region27: #{bottle2neck_forward.1} parent=11 // pred_region
        _
      $region28: #{bottle2neck_forward.1} parent=11 // pred_fallthru
        _
      // Predicated region
      $region29: #{bottle2neck_forward.1} parent=11 // pred_check
        %p240 = pneg %p145
      $region30: #{bottle2neck_forward.1} parent=11 // pred_check_branch
        %242 = sbr.rel (%p240) target = $region32
      $region31: #{bottle2neck_forward.1} parent=11 // pred_region
        _
      $region32: #{bottle2neck_forward.1} parent=11 // pred_fallthru
        _
      // Predicated region
      $region33: #{bottle2neck_forward.1} parent=11 // pred_check
        %p243 = pneg %p166
      $region34: #{bottle2neck_forward.1} parent=11 // pred_check_branch
        %245 = sbr.rel (%p243) target = $region36
      $region35: #{bottle2neck_forward.1} parent=11 // pred_region
        _
      $region36: #{bottle2neck_forward.1} parent=11 // pred_fallthru
        _
      // Predicated region
      $region37: #{bottle2neck_forward.1} parent=11 // pred_check
        %p246 = pneg %p187
      $region38: #{bottle2neck_forward.1} parent=11 // pred_check_branch
        %248 = sbr.rel (%p246) target = $region40
      $region39: #{bottle2neck_forward.1} parent=11 // pred_region
        _
      $region40: #{bottle2neck_forward.1} parent=11 // pred_fallthru
        _
    $region12: #{bottle2neck_forward.1} parent=5 // pred_fallthru
      _
    %p249 = scmp.lt.s32.totalorder %s14, 2
    // Predicated region
    $region41: #{bottle2neck_forward.1} parent=5 // pred_check
      %p250 = pneg %p249
    $region42: #{bottle2neck_forward.1} parent=5 // pred_check_branch
      %252 = sbr.rel (%p250) target = $region44
    $region43: #{bottle2neck_forward.1} parent=5 // pred_region
      // Predicated region
      $region45: #{bottle2neck_forward.1} parent=43 // pred_check
        %p253 = pneg %p34
      $region46: #{bottle2neck_forward.1} parent=43 // pred_check_branch
        %255 = sbr.rel (%p253) target = $region48
      $region47: #{bottle2neck_forward.1} parent=43 // pred_region
        %p256 = scmp.lt.s32.totalorder %s14, 1
        %s257 = scalar_select %p256, %s14, 1
        %s258 = smul.addr %s257, 8
        %s259 = smul.addr %s258, 8
        %s260 = scalar_lea.vmem %s0, %s259
      $region48: #{bottle2neck_forward.1} parent=43 // pred_fallthru
        _
    $region44: #{bottle2neck_forward.1} parent=5 // pred_fallthru
      _
    %p261 = scmp.le.s32.totalorder 1, %s14
    %p262 = scmp.lt.s32.totalorder %s14, 3
    %p263 = pnand %p261, %p262
    %p264 = pneg %p263
    // Predicated region
    $region49: #{bottle2neck_forward.1} parent=5 // pred_check
      _
    $region50: #{bottle2neck_forward.1} parent=5 // pred_check_branch
      %266 = sbr.rel (%p263) target = $region52
    $region51: #{bottle2neck_forward.1} parent=5 // pred_region
      %s267 = ssub.s32 %s14, 1
      %p268 = scmp.lt.s32.totalorder %s19, 1
      %s269 = scalar_select %p268, %s19, 1
      %s270 = smul.addr %s269, 8
      %s271 = smul.addr %s270, 8
      %s272 = scalar_lea.vmem %s0, %s271
      %p273 = pneg %p40
      %p274 = pneg %p37
      %p275 = pneg %p61
      %p276 = pneg %p58
      %p277 = pneg %p82
      %p278 = pneg %p79
      %p279 = pneg %p103
      %p280 = pneg %p100
      %p281 = pneg %p124
      %p282 = pneg %p121
      %p283 = pneg %p145
      %p284 = pneg %p142
      %p285 = pneg %p166
      %p286 = pneg %p163
      %p287 = pneg %p187
      %p288 = pneg %p184
      %p289 = pneg %p213
      %p290 = pneg %p210
      %p291 = scmp.lt.s32.totalorder %s19, 1
      %s292 = scalar_select %p291, %s19, 1
      %s293 = smul.addr %s292, 8
      %s294 = smul.addr %s293, 8
      %s295 = scalar_lea.vmem %s8, %s294
      %p296 = scmp.lt.s32.totalorder %s19, 1
      %s297 = scalar_select %p296, %s19, 1
      %s298 = smul.addr %s297, 8
      %s299 = smul.addr %s298, 8
      %s300 = scalar_lea.vmem %s0, %s299
      %p301 = scmp.lt.s32.totalorder %s19, 1
      %s302 = scalar_select %p301, %s19, 1
      %s303 = smul.addr %s302, 8
      %s304 = smul.addr %s303, 8
      %s305 = scalar_lea.vmem %s8, %s304
      %v306 = vld [vmem:[%s300] sm:$0xff]
      %v307 = vld [vmem:[%s300 + $0x8] sm:$0xff]
      %v308 = vld [vmem:[%s300 + $0x10] sm:$0xff]
      %v309 = vld [vmem:[%s300 + $0x18] sm:$0xff]
      %v310 = vld [vmem:[%s300 + $0x20] sm:$0xff]
      %v311 = vld [vmem:[%s300 + $0x28] sm:$0xff]
      %v312 = vld [vmem:[%s300 + $0x30] sm:$0xff]
      %v313 = vld [vmem:[%s300 + $0x38] sm:$0xff]
      %v314 = vld [vmem:[%s1] sm:$0xff]
      %v315 = vld [vmem:[%s1 + $0x8] sm:$0xff]
      %v316 = vld [vmem:[%s1 + $0x10] sm:$0xff]
      %v317 = vld [vmem:[%s1 + $0x18] sm:$0xff]
      %v318 = vld [vmem:[%s2] sm:$0xff]
      %v319 = vld [vmem:[%s2 + $0x8] sm:$0xff]
      %v320 = vld [vmem:[%s2 + $0x10] sm:$0xff]
      %v321 = vld [vmem:[%s2 + $0x18] sm:$0xff]
      %323 = vset.pattern.permute.xlu0 0
      %324 = vperm.xlu0 %323, %v318
      %v325 = vpop.permute.xlu0 %324
      %328 = vset.pattern.permute.xlu0 0
      %329 = vperm.xlu0 %328, %v319
      %v330 = vpop.permute.xlu0 %329
      %333 = vset.pattern.permute.xlu0 0
      %334 = vperm.xlu0 %333, %v320
      %v335 = vpop.permute.xlu0 %334
      %338 = vset.pattern.permute.xlu0 0
      %339 = vperm.xlu0 %338, %v321
      %v340 = vpop.permute.xlu0 %339
      %vm342 = vcmask 261120
      %v344 = vsel %vm342, %v314, 0
      %v347 = vsel %vm342, %v315, 0
      %v350 = vsel %vm342, %v316, 0
      %v353 = vsel %vm342, %v317, 0
      %355 = vmatpush.msra.mxu0 0.0
      %356 = vmatpush.msra.mxu0 0.0
      %357 = vmatpush.msra.mxu0 0.0
      %358 = vmatpush.msra.mxu0 0.0
      %359 = vmatpush.msra.mxu0 0.0
      %360 = vmatpush.msra.mxu0 0.0
      %361 = vmatpush.msra.mxu0 0.0
      %362 = vmatpush.msra.mxu0 0.0
      %363 = vmatpush.msra.mxu0 0.0
      %364 = vmatpush.msra.mxu0 0.0
      %365 = vmatpush.msra.mxu0 0.0
      %366 = vmatpush.msra.mxu0 0.0
      %367 = vmatpush.msra.mxu0 %v312
      %368 = vmatpush.msra.mxu0 %v310
      %369 = vmatpush.msra.mxu0 %v308
      %370 = vmatpush.msra.mxu0 %v306
      %371 = vmatmul.f32.gmra.mxu0 %v344
      %v372 = vpop.f32.mrf.mxu0
      %v373 = vadd.f32 %v325, %v372
      %374 = vmatmul.f32.gmra.mxu0 %v347
      %v375 = vpop.f32.mrf.mxu0
      %v376 = vadd.f32 %v330, %v375
      %377 = vmatmul.f32.gmra.mxu0 %v350
      %v378 = vpop.f32.mrf.mxu0
      %v379 = vadd.f32 %v335, %v378
      %380 = vmatmul.f32.gmra.mxu0 %v353
      %v381 = vpop.f32.mrf.mxu0
      %v382 = vadd.f32 %v340, %v381
      %383 = vdwg.mxu0
      %384 = vmatpush.msra.mxu0 0.0
      %385 = vmatpush.msra.mxu0 0.0
      %386 = vmatpush.msra.mxu0 0.0
      %387 = vmatpush.msra.mxu0 0.0
      %388 = vmatpush.msra.mxu0 0.0
      %389 = vmatpush.msra.mxu0 0.0
      %390 = vmatpush.msra.mxu0 0.0
      %391 = vmatpush.msra.mxu0 0.0
      %392 = vmatpush.msra.mxu0 0.0
      %393 = vmatpush.msra.mxu0 0.0
      %394 = vmatpush.msra.mxu0 0.0
      %395 = vmatpush.msra.mxu0 0.0
      %396 = vmatpush.msra.mxu0 %v313
      %397 = vmatpush.msra.mxu0 %v311
      %398 = vmatpush.msra.mxu0 %v309
      %399 = vmatpush.msra.mxu0 %v307
      %400 = vmatmul.f32.gmra.mxu0 %v344
      %v401 = vpop.f32.mrf.mxu0
      %v402 = vadd.f32 %v325, %v401
      %403 = vmatmul.f32.gmra.mxu0 %v347
      %v404 = vpop.f32.mrf.mxu0
      %v405 = vadd.f32 %v330, %v404
      %406 = vmatmul.f32.gmra.mxu0 %v350
      %v407 = vpop.f32.mrf.mxu0
      %v408 = vadd.f32 %v335, %v407
      %409 = vmatmul.f32.gmra.mxu0 %v353
      %v410 = vpop.f32.mrf.mxu0
      %v411 = vadd.f32 %v340, %v410
      %412 = vdwg.mxu0
      %v413 = vmax.f32 %v373, 0.0
      %v414 = vmax.f32 %v402, 0.0
      %v415 = vmax.f32 %v376, 0.0
      %v416 = vmax.f32 %v405, 0.0
      %v417 = vmax.f32 %v379, 0.0
      %v418 = vmax.f32 %v408, 0.0
      %v419 = vmax.f32 %v382, 0.0
      %v420 = vmax.f32 %v411, 0.0
      %421 = vrot.lane.b32.xlu0 %v413, 17
      %v422 = vpop.permute.xlu0 %421
      %423 = vrot.lane.b32.xlu0 %v414, 17
      %v424 = vpop.permute.xlu0 %423
      %v425 = vlaneseq
      %v426 = vand.u32 %v425, 127
      %vm427 = vcmp.lt.s32.totalorder %v426, 17
      %v428 = vsel %vm427, %v422, %v424
      %v429 = vsel %vm427, %v424, %v422
      %v430 = vld [vmem:[%s7] sm:$0xff]
      %v431 = vld [vmem:[%s7 + $0x8] sm:$0xff]
      %v432 = vmul.f32 %v429, %v430
      %v433 = vmul.f32 %v428, %v431
      %434 = vrot.lane.b32.xlu0 %v413, 16
      %v435 = vpop.permute.xlu0 %434
      %436 = vrot.lane.b32.xlu0 %v414, 16
      %v437 = vpop.permute.xlu0 %436
      %vm438 = vcmp.lt.s32.totalorder %v426, 16
      %v439 = vsel %vm438, %v435, %v437
      %v440 = vsel %vm438, %v437, %v435
      %s441 = scalar_lea.vmem %s7, 16
      %v442 = vld [vmem:[%s441] sm:$0xff]
      %v443 = vld [vmem:[%s441 + $0x8] sm:$0xff]
      %v444 = vmul.f32 %v440, %v442
      %v445 = vmul.f32 %v439, %v443
      %446 = vrot.lane.b32.xlu0 %v413, 15
      %v447 = vpop.permute.xlu0 %446
      %448 = vrot.lane.b32.xlu0 %v414, 15
      %v449 = vpop.permute.xlu0 %448
      %vm450 = vcmp.lt.s32.totalorder %v426, 15
      %v451 = vsel %vm450, %v447, %v449
      %v452 = vsel %vm450, %v449, %v447
      %s453 = scalar_lea.vmem %s7, 32
      %v454 = vld [vmem:[%s453] sm:$0xff]
      %v455 = vld [vmem:[%s453 + $0x8] sm:$0xff]
      %v456 = vmul.f32 %v452, %v454
      %v457 = vmul.f32 %v451, %v455
      %458 = vrot.lane.b32.xlu0 %v413, 1
      %v459 = vpop.permute.xlu0 %458
      %460 = vrot.lane.b32.xlu0 %v414, 1
      %v461 = vpop.permute.xlu0 %460
      %vm462 = vcmp.lt.s32.totalorder %v426, 1
      %v463 = vsel %vm462, %v459, %v461
      %v464 = vsel %vm462, %v461, %v459
      %s465 = scalar_lea.vmem %s7, 48
      %v466 = vld [vmem:[%s465] sm:$0xff]
      %v467 = vld [vmem:[%s465 + $0x8] sm:$0xff]
      %v468 = vmul.f32 %v464, %v466
      %v469 = vmul.f32 %v463, %v467
      %s470 = scalar_lea.vmem %s7, 64
      %v471 = vld [vmem:[%s470] sm:$0xff]
      %v472 = vld [vmem:[%s470 + $0x8] sm:$0xff]
      %v473 = vmul.f32 %v413, %v471
      %v474 = vmul.f32 %v414, %v472
      %475 = vrot.lane.b32.xlu0 %v413, 127
      %v476 = vpop.permute.xlu0 %475
      %477 = vrot.lane.b32.xlu0 %v414, 127
      %v478 = vpop.permute.xlu0 %477
      %vm479 = vcmp.lt.s32.totalorder %v426, 127
      %v480 = vsel %vm479, %v476, %v478
      %v481 = vsel %vm479, %v478, %v476
      %s482 = scalar_lea.vmem %s7, 80
      %v483 = vld [vmem:[%s482] sm:$0xff]
      %v484 = vld [vmem:[%s482 + $0x8] sm:$0xff]
      %v485 = vmul.f32 %v480, %v483
      %v486 = vmul.f32 %v481, %v484
      %487 = vrot.lane.b32.xlu0 %v413, 113
      %v488 = vpop.permute.xlu0 %487
      %489 = vrot.lane.b32.xlu0 %v414, 113
      %v490 = vpop.permute.xlu0 %489
      %vm491 = vcmp.lt.s32.totalorder %v426, 113
      %v492 = vsel %vm491, %v488, %v490
      %v493 = vsel %vm491, %v490, %v488
      %s494 = scalar_lea.vmem %s7, 96
      %v495 = vld [vmem:[%s494] sm:$0xff]
      %v496 = vld [vmem:[%s494 + $0x8] sm:$0xff]
      %v497 = vmul.f32 %v492, %v495
      %v498 = vmul.f32 %v493, %v496
      %499 = vrot.lane.b32.xlu0 %v413, 112
      %v500 = vpop.permute.xlu0 %499
      %501 = vrot.lane.b32.xlu0 %v414, 112
      %v502 = vpop.permute.xlu0 %501
      %vm503 = vcmp.lt.s32.totalorder %v426, 112
      %v504 = vsel %vm503, %v500, %v502
      %v505 = vsel %vm503, %v502, %v500
      %s506 = scalar_lea.vmem %s7, 112
      %v507 = vld [vmem:[%s506] sm:$0xff]
      %v508 = vld [vmem:[%s506 + $0x8] sm:$0xff]
      %v509 = vmul.f32 %v504, %v507
      %v510 = vmul.f32 %v505, %v508
      %511 = vrot.lane.b32.xlu0 %v413, 111
      %v512 = vpop.permute.xlu0 %511
      %513 = vrot.lane.b32.xlu0 %v414, 111
      %v514 = vpop.permute.xlu0 %513
      %vm515 = vcmp.lt.s32.totalorder %v426, 111
      %v516 = vsel %vm515, %v512, %v514
      %v517 = vsel %vm515, %v514, %v512
      %s518 = scalar_lea.vmem %s7, 128
      %v519 = vld [vmem:[%s518] sm:$0xff]
      %v520 = vld [vmem:[%s518 + $0x8] sm:$0xff]
      %v521 = vmul.f32 %v516, %v519
      %v522 = vmul.f32 %v517, %v520
      %v523 = vld [vmem:[%s3] sm:$0xff]
      %v524 = vld [vmem:[%s4] sm:$0xff]
      %526 = vset.pattern.permute.xlu0 0
      %527 = vperm.xlu0 %526, %v524
      %v528 = vpop.permute.xlu0 %527
      %vm530 = vcmask 588800
      %v532 = vsel %vm530, %v523, 0
      %534 = vmatpush.msra.mxu0 0.0
      %535 = vmatpush.msra.mxu0 0.0
      %536 = vmatpush.msra.mxu0 0.0
      %537 = vmatpush.msra.mxu0 0.0
      %538 = vmatpush.msra.mxu0 0.0
      %539 = vmatpush.msra.mxu0 0.0
      %540 = vmatpush.msra.mxu0 0.0
      %541 = vmatpush.msra.mxu0 %v521
      %542 = vmatpush.msra.mxu0 %v509
      %543 = vmatpush.msra.mxu0 %v497
      %544 = vmatpush.msra.mxu0 %v485
      %545 = vmatpush.msra.mxu0 %v473
      %546 = vmatpush.msra.mxu0 %v468
      %547 = vmatpush.msra.mxu0 %v456
      %548 = vmatpush.msra.mxu0 %v444
      %549 = vmatpush.msra.mxu0 %v432
      %550 = vmatmul.f32.gmra.mxu0 %v532
      %v551 = vpop.f32.mrf.mxu0
      %v552 = vadd.f32 %v528, %v551
      %553 = vdwg.mxu0
      %554 = vmatpush.msra.mxu0 0.0
      %555 = vmatpush.msra.mxu0 0.0
      %556 = vmatpush.msra.mxu0 0.0
      %557 = vmatpush.msra.mxu0 0.0
      %558 = vmatpush.msra.mxu0 0.0
      %559 = vmatpush.msra.mxu0 0.0
      %560 = vmatpush.msra.mxu0 0.0
      %561 = vmatpush.msra.mxu0 %v522
      %562 = vmatpush.msra.mxu0 %v510
      %563 = vmatpush.msra.mxu0 %v498
      %564 = vmatpush.msra.mxu0 %v486
      %565 = vmatpush.msra.mxu0 %v474
      %566 = vmatpush.msra.mxu0 %v469
      %567 = vmatpush.msra.mxu0 %v457
      %568 = vmatpush.msra.mxu0 %v445
      %569 = vmatpush.msra.mxu0 %v433
      %570 = vmatmul.f32.gmra.mxu0 %v532
      %v571 = vpop.f32.mrf.mxu0
      %v572 = vadd.f32 %v528, %v571
      %573 = vdwg.mxu0
      %v574 = vmax.f32 %v552, 0.0
      %v575 = vmax.f32 %v572, 0.0
      %v576 = vadd.f32 %v574, %v415
      %v577 = vadd.f32 %v575, %v416
      %578 = vrot.lane.b32.xlu0 %v576, 17
      %v579 = vpop.permute.xlu0 %578
      %580 = vrot.lane.b32.xlu0 %v577, 17
      %v581 = vpop.permute.xlu0 %580
      %v582 = vsel %vm427, %v579, %v581
      %v583 = vsel %vm427, %v581, %v579
      %v584 = vmul.f32 %v583, %v430
      %v585 = vmul.f32 %v582, %v431
      %586 = vrot.lane.b32.xlu0 %v576, 16
      %v587 = vpop.permute.xlu0 %586
      %588 = vrot.lane.b32.xlu0 %v577, 16
      %v589 = vpop.permute.xlu0 %588
      %v590 = vsel %vm438, %v587, %v589
      %v591 = vsel %vm438, %v589, %v587
      %v592 = vmul.f32 %v591, %v442
      %v593 = vmul.f32 %v590, %v443
      %594 = vrot.lane.b32.xlu0 %v576, 15
      %v595 = vpop.permute.xlu0 %594
      %596 = vrot.lane.b32.xlu0 %v577, 15
      %v597 = vpop.permute.xlu0 %596
      %v598 = vsel %vm450, %v595, %v597
      %v599 = vsel %vm450, %v597, %v595
      %v600 = vmul.f32 %v599, %v454
      %v601 = vmul.f32 %v598, %v455
      %602 = vrot.lane.b32.xlu0 %v576, 1
      %v603 = vpop.permute.xlu0 %602
      %604 = vrot.lane.b32.xlu0 %v577, 1
      %v605 = vpop.permute.xlu0 %604
      %v606 = vsel %vm462, %v603, %v605
      %v607 = vsel %vm462, %v605, %v603
      %v608 = vmul.f32 %v607, %v466
      %v609 = vmul.f32 %v606, %v467
      %v610 = vmul.f32 %v576, %v471
      %v611 = vmul.f32 %v577, %v472
      %612 = vrot.lane.b32.xlu0 %v576, 127
      %v613 = vpop.permute.xlu0 %612
      %614 = vrot.lane.b32.xlu0 %v577, 127
      %v615 = vpop.permute.xlu0 %614
      %v616 = vsel %vm479, %v613, %v615
      %v617 = vsel %vm479, %v615, %v613
      %v618 = vmul.f32 %v616, %v483
      %v619 = vmul.f32 %v617, %v484
      %620 = vrot.lane.b32.xlu0 %v576, 113
      %v621 = vpop.permute.xlu0 %620
      %622 = vrot.lane.b32.xlu0 %v577, 113
      %v623 = vpop.permute.xlu0 %622
      %v624 = vsel %vm491, %v621, %v623
      %v625 = vsel %vm491, %v623, %v621
      %v626 = vmul.f32 %v624, %v495
      %v627 = vmul.f32 %v625, %v496
      %628 = vrot.lane.b32.xlu0 %v576, 112
      %v629 = vpop.permute.xlu0 %628
      %630 = vrot.lane.b32.xlu0 %v577, 112
      %v631 = vpop.permute.xlu0 %630
      %v632 = vsel %vm503, %v629, %v631
      %v633 = vsel %vm503, %v631, %v629
      %v634 = vmul.f32 %v632, %v507
      %v635 = vmul.f32 %v633, %v508
      %636 = vrot.lane.b32.xlu0 %v576, 111
      %v637 = vpop.permute.xlu0 %636
      %638 = vrot.lane.b32.xlu0 %v577, 111
      %v639 = vpop.permute.xlu0 %638
      %v640 = vsel %vm515, %v637, %v639
      %v641 = vsel %vm515, %v639, %v637
      %v642 = vmul.f32 %v640, %v519
      %v643 = vmul.f32 %v641, %v520
      %s644 = scalar_lea.vmem %s3, 8
      %v645 = vld [vmem:[%s644] sm:$0xff]
      %s646 = scalar_lea.vmem %s4, 8
      %v647 = vld [vmem:[%s646] sm:$0xff]
      %649 = vset.pattern.permute.xlu0 0
      %650 = vperm.xlu0 %649, %v647
      %v651 = vpop.permute.xlu0 %650
      %v654 = vsel %vm530, %v645, 0
      %656 = vmatpush.msra.mxu0 0.0
      %657 = vmatpush.msra.mxu0 0.0
      %658 = vmatpush.msra.mxu0 0.0
      %659 = vmatpush.msra.mxu0 0.0
      %660 = vmatpush.msra.mxu0 0.0
      %661 = vmatpush.msra.mxu0 0.0
      %662 = vmatpush.msra.mxu0 0.0
      %663 = vmatpush.msra.mxu0 %v642
      %664 = vmatpush.msra.mxu0 %v634
      %665 = vmatpush.msra.mxu0 %v626
      %666 = vmatpush.msra.mxu0 %v618
      %667 = vmatpush.msra.mxu0 %v610
      %668 = vmatpush.msra.mxu0 %v608
      %669 = vmatpush.msra.mxu0 %v600
      %670 = vmatpush.msra.mxu0 %v592
      %671 = vmatpush.msra.mxu0 %v584
      %672 = vmatmul.f32.gmra.mxu0 %v654
      %v673 = vpop.f32.mrf.mxu0
      %v674 = vadd.f32 %v651, %v673
      %675 = vdwg.mxu0
      %676 = vmatpush.msra.mxu0 0.0
      %677 = vmatpush.msra.mxu0 0.0
      %678 = vmatpush.msra.mxu0 0.0
      %679 = vmatpush.msra.mxu0 0.0
      %680 = vmatpush.msra.mxu0 0.0
      %681 = vmatpush.msra.mxu0 0.0
      %682 = vmatpush.msra.mxu0 0.0
      %683 = vmatpush.msra.mxu0 %v643
      %684 = vmatpush.msra.mxu0 %v635
      %685 = vmatpush.msra.mxu0 %v627
      %686 = vmatpush.msra.mxu0 %v619
      %687 = vmatpush.msra.mxu0 %v611
      %688 = vmatpush.msra.mxu0 %v609
      %689 = vmatpush.msra.mxu0 %v601
      %690 = vmatpush.msra.mxu0 %v593
      %691 = vmatpush.msra.mxu0 %v585
      %692 = vmatmul.f32.gmra.mxu0 %v654
      %v693 = vpop.f32.mrf.mxu0
      %v694 = vadd.f32 %v651, %v693
      %695 = vdwg.mxu0
      %v696 = vmax.f32 %v674, 0.0
      %v697 = vmax.f32 %v694, 0.0
      %v698 = vadd.f32 %v696, %v417
      %v699 = vadd.f32 %v697, %v418
      %700 = vrot.lane.b32.xlu0 %v698, 17
      %v701 = vpop.permute.xlu0 %700
      %702 = vrot.lane.b32.xlu0 %v699, 17
      %v703 = vpop.permute.xlu0 %702
      %v704 = vsel %vm427, %v701, %v703
      %v705 = vsel %vm427, %v703, %v701
      %v706 = vmul.f32 %v705, %v430
      %v707 = vmul.f32 %v704, %v431
      %708 = vrot.lane.b32.xlu0 %v698, 16
      %v709 = vpop.permute.xlu0 %708
      %710 = vrot.lane.b32.xlu0 %v699, 16
      %v711 = vpop.permute.xlu0 %710
      %v712 = vsel %vm438, %v709, %v711
      %v713 = vsel %vm438, %v711, %v709
      %v714 = vmul.f32 %v713, %v442
      %v715 = vmul.f32 %v712, %v443
      %716 = vrot.lane.b32.xlu0 %v698, 15
      %v717 = vpop.permute.xlu0 %716
      %718 = vrot.lane.b32.xlu0 %v699, 15
      %v719 = vpop.permute.xlu0 %718
      %v720 = vsel %vm450, %v717, %v719
      %v721 = vsel %vm450, %v719, %v717
      %v722 = vmul.f32 %v721, %v454
      %v723 = vmul.f32 %v720, %v455
      %724 = vrot.lane.b32.xlu0 %v698, 1
      %v725 = vpop.permute.xlu0 %724
      %726 = vrot.lane.b32.xlu0 %v699, 1
      %v727 = vpop.permute.xlu0 %726
      %v728 = vsel %vm462, %v725, %v727
      %v729 = vsel %vm462, %v727, %v725
      %v730 = vmul.f32 %v729, %v466
      %v731 = vmul.f32 %v728, %v467
      %v732 = vmul.f32 %v698, %v471
      %v733 = vmul.f32 %v699, %v472
      %734 = vrot.lane.b32.xlu0 %v698, 127
      %v735 = vpop.permute.xlu0 %734
      %736 = vrot.lane.b32.xlu0 %v699, 127
      %v737 = vpop.permute.xlu0 %736
      %v738 = vsel %vm479, %v735, %v737
      %v739 = vsel %vm479, %v737, %v735
      %v740 = vmul.f32 %v738, %v483
      %v741 = vmul.f32 %v739, %v484
      %742 = vrot.lane.b32.xlu0 %v698, 113
      %v743 = vpop.permute.xlu0 %742
      %744 = vrot.lane.b32.xlu0 %v699, 113
      %v745 = vpop.permute.xlu0 %744
      %v746 = vsel %vm491, %v743, %v745
      %v747 = vsel %vm491, %v745, %v743
      %v748 = vmul.f32 %v746, %v495
      %v749 = vmul.f32 %v747, %v496
      %750 = vrot.lane.b32.xlu0 %v698, 112
      %v751 = vpop.permute.xlu0 %750
      %752 = vrot.lane.b32.xlu0 %v699, 112
      %v753 = vpop.permute.xlu0 %752
      %v754 = vsel %vm503, %v751, %v753
      %v755 = vsel %vm503, %v753, %v751
      %v756 = vmul.f32 %v754, %v507
      %v757 = vmul.f32 %v755, %v508
      %758 = vrot.lane.b32.xlu0 %v698, 111
      %v759 = vpop.permute.xlu0 %758
      %760 = vrot.lane.b32.xlu0 %v699, 111
      %v761 = vpop.permute.xlu0 %760
      %v762 = vsel %vm515, %v759, %v761
      %v763 = vsel %vm515, %v761, %v759
      %v764 = vmul.f32 %v762, %v519
      %v765 = vmul.f32 %v763, %v520
      %s766 = scalar_lea.vmem %s3, 16
      %v767 = vld [vmem:[%s766] sm:$0xff]
      %s768 = scalar_lea.vmem %s4, 16
      %v769 = vld [vmem:[%s768] sm:$0xff]
      %771 = vset.pattern.permute.xlu0 0
      %772 = vperm.xlu0 %771, %v769
      %v773 = vpop.permute.xlu0 %772
      %v776 = vsel %vm530, %v767, 0
      %778 = vmatpush.msra.mxu0 0.0
      %779 = vmatpush.msra.mxu0 0.0
      %780 = vmatpush.msra.mxu0 0.0
      %781 = vmatpush.msra.mxu0 0.0
      %782 = vmatpush.msra.mxu0 0.0
      %783 = vmatpush.msra.mxu0 0.0
      %784 = vmatpush.msra.mxu0 0.0
      %785 = vmatpush.msra.mxu0 %v764
      %786 = vmatpush.msra.mxu0 %v756
      %787 = vmatpush.msra.mxu0 %v748
      %788 = vmatpush.msra.mxu0 %v740
      %789 = vmatpush.msra.mxu0 %v732
      %790 = vmatpush.msra.mxu0 %v730
      %791 = vmatpush.msra.mxu0 %v722
      %792 = vmatpush.msra.mxu0 %v714
      %793 = vmatpush.msra.mxu0 %v706
      %794 = vmatmul.f32.gmra.mxu0 %v776
      %v795 = vpop.f32.mrf.mxu0
      %v796 = vadd.f32 %v773, %v795
      %797 = vdwg.mxu0
      %798 = vmatpush.msra.mxu0 0.0
      %799 = vmatpush.msra.mxu0 0.0
      %800 = vmatpush.msra.mxu0 0.0
      %801 = vmatpush.msra.mxu0 0.0
      %802 = vmatpush.msra.mxu0 0.0
      %803 = vmatpush.msra.mxu0 0.0
      %804 = vmatpush.msra.mxu0 0.0
      %805 = vmatpush.msra.mxu0 %v765
      %806 = vmatpush.msra.mxu0 %v757
      %807 = vmatpush.msra.mxu0 %v749
      %808 = vmatpush.msra.mxu0 %v741
      %809 = vmatpush.msra.mxu0 %v733
      %810 = vmatpush.msra.mxu0 %v731
      %811 = vmatpush.msra.mxu0 %v723
      %812 = vmatpush.msra.mxu0 %v715
      %813 = vmatpush.msra.mxu0 %v707
      %814 = vmatmul.f32.gmra.mxu0 %v776
      %v815 = vpop.f32.mrf.mxu0
      %v816 = vadd.f32 %v773, %v815
      %817 = vdwg.mxu0
      %v818 = vmax.f32 %v796, 0.0
      %v819 = vmax.f32 %v816, 0.0
      %v820 = vld [vmem:[%s5] sm:$0xff]
      %v821 = vld [vmem:[%s5 + $0x8] sm:$0xff]
      %v822 = vld [vmem:[%s5 + $0x10] sm:$0xff]
      %v823 = vld [vmem:[%s5 + $0x18] sm:$0xff]
      %s824 = scalar_lea.vmem %s5, 32
      %v825 = vld [vmem:[%s824] sm:$0xff]
      %v826 = vld [vmem:[%s824 + $0x8] sm:$0xff]
      %v827 = vld [vmem:[%s824 + $0x10] sm:$0xff]
      %v828 = vld [vmem:[%s824 + $0x18] sm:$0xff]
      %vm829 = vcmask 64512
      %v831 = vsel %vm829, %v825, 0
      %v834 = vsel %vm829, %v826, 0
      %v837 = vsel %vm829, %v827, 0
      %v840 = vsel %vm829, %v828, 0
      %842 = vmatpush.msra.mxu0 0.0
      %843 = vmatpush.msra.mxu0 0.0
      %844 = vmatpush.msra.mxu0 0.0
      %845 = vmatpush.msra.mxu0 0.0
      %846 = vmatpush.msra.mxu0 0.0
      %847 = vmatpush.msra.mxu0 0.0
      %848 = vmatpush.msra.mxu0 0.0
      %849 = vmatpush.msra.mxu0 0.0
      %850 = vmatpush.msra.mxu0 0.0
      %851 = vmatpush.msra.mxu0 0.0
      %852 = vmatpush.msra.mxu0 0.0
      %853 = vmatpush.msra.mxu0 0.0
      %854 = vmatpush.msra.mxu0 0.0
      %855 = vmatpush.msra.mxu0 0.0
      %856 = vmatpush.msra.mxu0 0.0
      %857 = vmatpush.msra.mxu0 %v696
      %858 = vmatmul.f32.gmra.mxu0 %v831
      %v859 = vpop.f32.mrf.mxu0
      %v860 = vadd.f32 0.0, %v859
      %861 = vmatmul.f32.gmra.mxu0 %v834
      %v862 = vpop.f32.mrf.mxu0
      %v863 = vadd.f32 0.0, %v862
      %864 = vmatmul.f32.gmra.mxu0 %v837
      %v865 = vpop.f32.mrf.mxu0
      %v866 = vadd.f32 0.0, %v865
      %867 = vmatmul.f32.gmra.mxu0 %v840
      %v868 = vpop.f32.mrf.mxu0
      %v869 = vadd.f32 0.0, %v868
      %870 = vdwg.mxu0
      %871 = vmatpush.msra.mxu0 0.0
      %872 = vmatpush.msra.mxu0 0.0
      %873 = vmatpush.msra.mxu0 0.0
      %874 = vmatpush.msra.mxu0 0.0
      %875 = vmatpush.msra.mxu0 0.0
      %876 = vmatpush.msra.mxu0 0.0
      %877 = vmatpush.msra.mxu0 0.0
      %878 = vmatpush.msra.mxu0 0.0
      %879 = vmatpush.msra.mxu0 0.0
      %880 = vmatpush.msra.mxu0 0.0
      %881 = vmatpush.msra.mxu0 0.0
      %882 = vmatpush.msra.mxu0 0.0
      %883 = vmatpush.msra.mxu0 0.0
      %884 = vmatpush.msra.mxu0 0.0
      %885 = vmatpush.msra.mxu0 0.0
      %886 = vmatpush.msra.mxu0 %v697
      %887 = vmatmul.f32.gmra.mxu0 %v831
      %v888 = vpop.f32.mrf.mxu0
      %v889 = vadd.f32 0.0, %v888
      %890 = vmatmul.f32.gmra.mxu0 %v834
      %v891 = vpop.f32.mrf.mxu0
      %v892 = vadd.f32 0.0, %v891
      %893 = vmatmul.f32.gmra.mxu0 %v837
      %v894 = vpop.f32.mrf.mxu0
      %v895 = vadd.f32 0.0, %v894
      %896 = vmatmul.f32.gmra.mxu0 %v840
      %v897 = vpop.f32.mrf.mxu0
      %v898 = vadd.f32 0.0, %v897
      %899 = vdwg.mxu0
      %v901 = vsel %vm829, %v820, 0
      %v904 = vsel %vm829, %v821, 0
      %v907 = vsel %vm829, %v822, 0
      %v910 = vsel %vm829, %v823, 0
      %912 = vmatpush.msra.mxu0 0.0
      %913 = vmatpush.msra.mxu0 0.0
      %914 = vmatpush.msra.mxu0 0.0
      %915 = vmatpush.msra.mxu0 0.0
      %916 = vmatpush.msra.mxu0 0.0
      %917 = vmatpush.msra.mxu0 0.0
      %918 = vmatpush.msra.mxu0 0.0
      %919 = vmatpush.msra.mxu0 0.0
      %920 = vmatpush.msra.mxu0 0.0
      %921 = vmatpush.msra.mxu0 0.0
      %922 = vmatpush.msra.mxu0 0.0
      %923 = vmatpush.msra.mxu0 0.0
      %924 = vmatpush.msra.mxu0 0.0
      %925 = vmatpush.msra.mxu0 0.0
      %926 = vmatpush.msra.mxu0 0.0
      %927 = vmatpush.msra.mxu0 %v574
      %928 = vmatmul.f32.gmra.mxu0 %v901
      %v929 = vpop.f32.mrf.mxu0
      %v930 = vadd.f32 %v860, %v929
      %931 = vmatmul.f32.gmra.mxu0 %v904
      %v932 = vpop.f32.mrf.mxu0
      %v933 = vadd.f32 %v863, %v932
      %934 = vmatmul.f32.gmra.mxu0 %v907
      %v935 = vpop.f32.mrf.mxu0
      %v936 = vadd.f32 %v866, %v935
      %937 = vmatmul.f32.gmra.mxu0 %v910
      %v938 = vpop.f32.mrf.mxu0
      %v939 = vadd.f32 %v869, %v938
      %940 = vdwg.mxu0
      %941 = vmatpush.msra.mxu0 0.0
      %942 = vmatpush.msra.mxu0 0.0
      %943 = vmatpush.msra.mxu0 0.0
      %944 = vmatpush.msra.mxu0 0.0
      %945 = vmatpush.msra.mxu0 0.0
      %946 = vmatpush.msra.mxu0 0.0
      %947 = vmatpush.msra.mxu0 0.0
      %948 = vmatpush.msra.mxu0 0.0
      %949 = vmatpush.msra.mxu0 0.0
      %950 = vmatpush.msra.mxu0 0.0
      %951 = vmatpush.msra.mxu0 0.0
      %952 = vmatpush.msra.mxu0 0.0
      %953 = vmatpush.msra.mxu0 0.0
      %954 = vmatpush.msra.mxu0 0.0
      %955 = vmatpush.msra.mxu0 0.0
      %956 = vmatpush.msra.mxu0 %v575
      %957 = vmatmul.f32.gmra.mxu0 %v901
      %v958 = vpop.f32.mrf.mxu0
      %v959 = vadd.f32 %v889, %v958
      %960 = vmatmul.f32.gmra.mxu0 %v904
      %v961 = vpop.f32.mrf.mxu0
      %v962 = vadd.f32 %v892, %v961
      %963 = vmatmul.f32.gmra.mxu0 %v907
      %v964 = vpop.f32.mrf.mxu0
      %v965 = vadd.f32 %v895, %v964
      %966 = vmatmul.f32.gmra.mxu0 %v910
      %v967 = vpop.f32.mrf.mxu0
      %v968 = vadd.f32 %v898, %v967
      %969 = vdwg.mxu0
      %s970 = scalar_lea.vmem %s5, 64
      %v971 = vld [vmem:[%s970] sm:$0xff]
      %v972 = vld [vmem:[%s970 + $0x8] sm:$0xff]
      %v973 = vld [vmem:[%s970 + $0x10] sm:$0xff]
      %v974 = vld [vmem:[%s970 + $0x18] sm:$0xff]
      %v976 = vsel %vm829, %v971, 0
      %v979 = vsel %vm829, %v972, 0
      %v982 = vsel %vm829, %v973, 0
      %v985 = vsel %vm829, %v974, 0
      %987 = vmatpush.msra.mxu0 0.0
      %988 = vmatpush.msra.mxu0 0.0
      %989 = vmatpush.msra.mxu0 0.0
      %990 = vmatpush.msra.mxu0 0.0
      %991 = vmatpush.msra.mxu0 0.0
      %992 = vmatpush.msra.mxu0 0.0
      %993 = vmatpush.msra.mxu0 0.0
      %994 = vmatpush.msra.mxu0 0.0
      %995 = vmatpush.msra.mxu0 0.0
      %996 = vmatpush.msra.mxu0 0.0
      %997 = vmatpush.msra.mxu0 0.0
      %998 = vmatpush.msra.mxu0 0.0
      %999 = vmatpush.msra.mxu0 0.0
      %1000 = vmatpush.msra.mxu0 0.0
      %1001 = vmatpush.msra.mxu0 0.0
      %1002 = vmatpush.msra.mxu0 %v818
      %1003 = vmatmul.f32.gmra.mxu0 %v976
      %v1004 = vpop.f32.mrf.mxu0
      %v1005 = vadd.f32 0.0, %v1004
      %1006 = vmatmul.f32.gmra.mxu0 %v979
      %v1007 = vpop.f32.mrf.mxu0
      %v1008 = vadd.f32 0.0, %v1007
      %1009 = vmatmul.f32.gmra.mxu0 %v982
      %v1010 = vpop.f32.mrf.mxu0
      %v1011 = vadd.f32 0.0, %v1010
      %1012 = vmatmul.f32.gmra.mxu0 %v985
      %v1013 = vpop.f32.mrf.mxu0
      %v1014 = vadd.f32 0.0, %v1013
      %1015 = vdwg.mxu0
      %1016 = vmatpush.msra.mxu0 0.0
      %1017 = vmatpush.msra.mxu0 0.0
      %1018 = vmatpush.msra.mxu0 0.0
      %1019 = vmatpush.msra.mxu0 0.0
      %1020 = vmatpush.msra.mxu0 0.0
      %1021 = vmatpush.msra.mxu0 0.0
      %1022 = vmatpush.msra.mxu0 0.0
      %1023 = vmatpush.msra.mxu0 0.0
      %1024 = vmatpush.msra.mxu0 0.0
      %1025 = vmatpush.msra.mxu0 0.0
      %1026 = vmatpush.msra.mxu0 0.0
      %1027 = vmatpush.msra.mxu0 0.0
      %1028 = vmatpush.msra.mxu0 0.0
      %1029 = vmatpush.msra.mxu0 0.0
      %1030 = vmatpush.msra.mxu0 0.0
      %1031 = vmatpush.msra.mxu0 %v819
      %1032 = vmatmul.f32.gmra.mxu0 %v976
      %v1033 = vpop.f32.mrf.mxu0
      %v1034 = vadd.f32 0.0, %v1033
      %1035 = vmatmul.f32.gmra.mxu0 %v979
      %v1036 = vpop.f32.mrf.mxu0
      %v1037 = vadd.f32 0.0, %v1036
      %1038 = vmatmul.f32.gmra.mxu0 %v982
      %v1039 = vpop.f32.mrf.mxu0
      %v1040 = vadd.f32 0.0, %v1039
      %1041 = vmatmul.f32.gmra.mxu0 %v985
      %v1042 = vpop.f32.mrf.mxu0
      %v1043 = vadd.f32 0.0, %v1042
      %1044 = vdwg.mxu0
      %v1045 = vadd.f32 %v930, %v1005
      %v1046 = vadd.f32 %v959, %v1034
      %v1047 = vadd.f32 %v933, %v1008
      %v1048 = vadd.f32 %v962, %v1037
      %v1049 = vadd.f32 %v936, %v1011
      %v1050 = vadd.f32 %v965, %v1040
      %v1051 = vadd.f32 %v939, %v1014
      %v1052 = vadd.f32 %v968, %v1043
      %s1053 = scalar_lea.vmem %s5, 96
      %v1054 = vld [vmem:[%s1053] sm:$0xff]
      %v1055 = vld [vmem:[%s1053 + $0x8] sm:$0xff]
      %v1056 = vld [vmem:[%s1053 + $0x10] sm:$0xff]
      %v1057 = vld [vmem:[%s1053 + $0x18] sm:$0xff]
      %v1059 = vsel %vm829, %v1054, 0
      %v1062 = vsel %vm829, %v1055, 0
      %v1065 = vsel %vm829, %v1056, 0
      %v1068 = vsel %vm829, %v1057, 0
      %1070 = vmatpush.msra.mxu0 0.0
      %1071 = vmatpush.msra.mxu0 0.0
      %1072 = vmatpush.msra.mxu0 0.0
      %1073 = vmatpush.msra.mxu0 0.0
      %1074 = vmatpush.msra.mxu0 0.0
      %1075 = vmatpush.msra.mxu0 0.0
      %1076 = vmatpush.msra.mxu0 0.0
      %1077 = vmatpush.msra.mxu0 0.0
      %1078 = vmatpush.msra.mxu0 0.0
      %1079 = vmatpush.msra.mxu0 0.0
      %1080 = vmatpush.msra.mxu0 0.0
      %1081 = vmatpush.msra.mxu0 0.0
      %1082 = vmatpush.msra.mxu0 0.0
      %1083 = vmatpush.msra.mxu0 0.0
      %1084 = vmatpush.msra.mxu0 0.0
      %1085 = vmatpush.msra.mxu0 %v419
      %1086 = vmatmul.f32.gmra.mxu0 %v1059
      %v1087 = vpop.f32.mrf.mxu0
      %v1088 = vadd.f32 0.0, %v1087
      %1089 = vmatmul.f32.gmra.mxu0 %v1062
      %v1090 = vpop.f32.mrf.mxu0
      %v1091 = vadd.f32 0.0, %v1090
      %1092 = vmatmul.f32.gmra.mxu0 %v1065
      %v1093 = vpop.f32.mrf.mxu0
      %v1094 = vadd.f32 0.0, %v1093
      %1095 = vmatmul.f32.gmra.mxu0 %v1068
      %v1096 = vpop.f32.mrf.mxu0
      %v1097 = vadd.f32 0.0, %v1096
      %1098 = vdwg.mxu0
      %1099 = vmatpush.msra.mxu0 0.0
      %1100 = vmatpush.msra.mxu0 0.0
      %1101 = vmatpush.msra.mxu0 0.0
      %1102 = vmatpush.msra.mxu0 0.0
      %1103 = vmatpush.msra.mxu0 0.0
      %1104 = vmatpush.msra.mxu0 0.0
      %1105 = vmatpush.msra.mxu0 0.0
      %1106 = vmatpush.msra.mxu0 0.0
      %1107 = vmatpush.msra.mxu0 0.0
      %1108 = vmatpush.msra.mxu0 0.0
      %1109 = vmatpush.msra.mxu0 0.0
      %1110 = vmatpush.msra.mxu0 0.0
      %1111 = vmatpush.msra.mxu0 0.0
      %1112 = vmatpush.msra.mxu0 0.0
      %1113 = vmatpush.msra.mxu0 0.0
      %1114 = vmatpush.msra.mxu0 %v420
      %1115 = vmatmul.f32.gmra.mxu0 %v1059
      %v1116 = vpop.f32.mrf.mxu0
      %v1117 = vadd.f32 0.0, %v1116
      %1118 = vmatmul.f32.gmra.mxu0 %v1062
      %v1119 = vpop.f32.mrf.mxu0
      %v1120 = vadd.f32 0.0, %v1119
      %1121 = vmatmul.f32.gmra.mxu0 %v1065
      %v1122 = vpop.f32.mrf.mxu0
      %v1123 = vadd.f32 0.0, %v1122
      %1124 = vmatmul.f32.gmra.mxu0 %v1068
      %v1125 = vpop.f32.mrf.mxu0
      %v1126 = vadd.f32 0.0, %v1125
      %1127 = vdwg.mxu0
      %v1128 = vadd.f32 %v1045, %v1088
      %v1129 = vadd.f32 %v1046, %v1117
      %v1130 = vadd.f32 %v1047, %v1091
      %v1131 = vadd.f32 %v1048, %v1120
      %v1132 = vadd.f32 %v1049, %v1094
      %v1133 = vadd.f32 %v1050, %v1123
      %v1134 = vadd.f32 %v1051, %v1097
      %v1135 = vadd.f32 %v1052, %v1126
      %v1136 = vld [vmem:[%s6] sm:$0xff]
      %v1137 = vld [vmem:[%s6 + $0x8] sm:$0xff]
      %v1138 = vld [vmem:[%s6 + $0x10] sm:$0xff]
      %v1139 = vld [vmem:[%s6 + $0x18] sm:$0xff]
      %1141 = vset.pattern.permute.xlu0 0
      %1142 = vperm.xlu0 %1141, %v1136
      %v1143 = vpop.permute.xlu0 %1142
      %1146 = vset.pattern.permute.xlu0 0
      %1147 = vperm.xlu0 %1146, %v1137
      %v1148 = vpop.permute.xlu0 %1147
      %1151 = vset.pattern.permute.xlu0 0
      %1152 = vperm.xlu0 %1151, %v1138
      %v1153 = vpop.permute.xlu0 %1152
      %1156 = vset.pattern.permute.xlu0 0
      %1157 = vperm.xlu0 %1156, %v1139
      %v1158 = vpop.permute.xlu0 %1157
      %v1160 = vadd.f32 %v1128, %v1143
      %v1161 = vadd.f32 %v1129, %v1143
      %v1162 = vadd.f32 %v1130, %v1148
      %v1163 = vadd.f32 %v1131, %v1148
      %v1164 = vadd.f32 %v1132, %v1153
      %v1165 = vadd.f32 %v1133, %v1153
      %v1166 = vadd.f32 %v1134, %v1158
      %v1167 = vadd.f32 %v1135, %v1158
      %v1168 = vadd.f32 %v1160, %v306
      %v1169 = vadd.f32 %v1161, %v307
      %v1170 = vadd.f32 %v1162, %v308
      %v1171 = vadd.f32 %v1163, %v309
      %v1172 = vadd.f32 %v1164, %v310
      %v1173 = vadd.f32 %v1165, %v311
      %v1174 = vadd.f32 %v1166, %v312
      %v1175 = vadd.f32 %v1167, %v313
      %v1176 = vmax.f32 %v1168, 0.0
      %v1177 = vmax.f32 %v1169, 0.0
      %v1178 = vmax.f32 %v1170, 0.0
      %v1179 = vmax.f32 %v1171, 0.0
      %v1180 = vmax.f32 %v1172, 0.0
      %v1181 = vmax.f32 %v1173, 0.0
      %v1182 = vmax.f32 %v1174, 0.0
      %v1183 = vmax.f32 %v1175, 0.0
      %1184 = vst [vmem:[%s305] sm:$0xff] %v1176
      %1185 = vst [vmem:[%s305 + $0x8] sm:$0xff] %v1177
      %1186 = vst [vmem:[%s305 + $0x10] sm:$0xff] %v1178
      %1187 = vst [vmem:[%s305 + $0x18] sm:$0xff] %v1179
      %1188 = vst [vmem:[%s305 + $0x20] sm:$0xff] %v1180
      %1189 = vst [vmem:[%s305 + $0x28] sm:$0xff] %v1181
      %1190 = vst [vmem:[%s305 + $0x30] sm:$0xff] %v1182
      %1191 = vst [vmem:[%s305 + $0x38] sm:$0xff] %v1183
      %p1192 = scmp.lt.s32.totalorder %s19, 1
      %s1193 = scalar_select %p1192, %s19, 1
      %s1194 = smul.addr %s1193, 8
      %s1195 = smul.addr %s1194, 8
      %s1196 = scalar_lea.vmem %s8, %s1195
      // Predicated region
      $region53: #{bottle2neck_forward.1} parent=51 // pred_check
        %p1197 = pneg %p210
      $region54: #{bottle2neck_forward.1} parent=51 // pred_check_branch
        %1199 = sbr.rel (%p1197) target = $region56
      $region55: #{bottle2neck_forward.1} parent=51 // pred_region
        _
      $region56: #{bottle2neck_forward.1} parent=51 // pred_fallthru
        _
    $region52: #{bottle2neck_forward.1} parent=5 // pred_fallthru
      _
    %p1200 = scmp.le.s32.totalorder 2, %s14
    // Predicated region
    $region57: #{bottle2neck_forward.1} parent=5 // pred_check
      %p1201 = pneg %p1200
    $region58: #{bottle2neck_forward.1} parent=5 // pred_check_branch
      %1203 = sbr.rel (%p1201) target = $region60
    $region59: #{bottle2neck_forward.1} parent=5 // pred_region
      %s1204 = ssub.s32 %s14, 2
      // Predicated region
      $region61: #{bottle2neck_forward.1} parent=59 // pred_check
        %p1205 = pneg %p216
      $region62: #{bottle2neck_forward.1} parent=59 // pred_check_branch
        %1207 = sbr.rel (%p1205) target = $region64
      $region63: #{bottle2neck_forward.1} parent=59 // pred_region
        %p1208 = scmp.lt.s32.totalorder %s20, 1
        %s1209 = scalar_select %p1208, %s20, 1
        %s1210 = smul.addr %s1209, 8
        %s1211 = smul.addr %s1210, 8
        %s1212 = scalar_lea.vmem %s8, %s1211
      $region64: #{bottle2neck_forward.1} parent=59 // pred_fallthru
        _
    $region60: #{bottle2neck_forward.1} parent=5 // pred_fallthru
      _
  $region6: #{bottle2neck_forward.1} parent=0 // loop_footer
    %s18 = sadd.s32 1, %s14
  $region7: #{bottle2neck_forward.1} parent=0 // loop_footer_branch
    %13 = sbr.rel target = $region3
  $region8: #{bottle2neck_forward.1} parent=0 // loop_exit
    _

</llo_original>
